<compile_context>
chip_gen: v7x
topology: tpu7x:2x2x1
jax: 0.10.0
libtpu: 0.0.40
codegen_flags: <defaults>
</compile_context>

<pallas_src>
import functools

import jax
import jax.numpy as jnp
from jax.experimental import pallas as pl
from jax.experimental.pallas import tpu as pltpu

NUM_CLASSES = 2          # softmax activation: background + 1 foreground class
NUM_ANCHORS = 3
FEAT_CH = 32
TOP_N = 32
LANES = 128              # lane-dense width for kernel weights / output slab
CIN_PAD = 8              # input channels zero-padded to a sublane multiple

N_CLS = NUM_ANCHORS * NUM_CLASSES        # 6  cls logits (conv channel order)
N_BOX = NUM_ANCHORS * 4                  # 12 box deltas

BBOX_XFORM_CLIP = 4.135166556742356      # log(1000/16)


# --------------------------- Pallas kernel -----------------------------------

def _fused_forward_kernel(x_ref, ws_ref, bs_ref, pyr_ref, wh_ref, bh_ref,
                          o_ref):
    """Whole forward for one image, entirely in VMEM:

        feat0 = relu(x @ Wstem + bstem)          (HW, 128)   f32 acc
        rows  = PYR @ feat0                      (336, 128)  pyramid levels 0/1/2
        slab  = rows @ Wheads + bheads           (336, 128)  cls(6)|box(12)|zeros
    """
    x = x_ref[0]                                               # (HW, CIN_PAD) bf16
    feat0 = jnp.dot(x, ws_ref[...], preferred_element_type=jnp.float32)
    feat0 = jnp.maximum(feat0 + bs_ref[...], 0.0)              # (HW, 128) f32

    rows = jnp.dot(pyr_ref[...], feat0.astype(jnp.bfloat16),
                   preferred_element_type=jnp.float32)         # (R_ALL, 128) f32

    slab = jnp.dot(rows.astype(jnp.bfloat16), wh_ref[...],
                   preferred_element_type=jnp.float32) + bh_ref[...]
    o_ref[0] = slab.astype(o_ref.dtype)


def fused_forward(x_rows, params):
    """x_rows: (N, H*W, CIN_PAD) bf16 -> head slab (N, R_ALL, 128) f32."""
    N, HW, CINP = x_rows.shape
    r_all = params["pyr_p"].shape[0]

    flops = 2 * N * (HW * CINP * LANES + r_all * HW * LANES + r_all * LANES * LANES)
    bytes_accessed = int(
        x_rows.size * 2
        + params["w_stem_p"].size * 2 + params["pyr_p"].size * 2
        + params["w_heads_p"].size * 2
        + params["b_stem_p"].size * 4 + params["b_heads_p"].size * 4
        + N * r_all * LANES * 4)

    return pl.pallas_call(
        _fused_forward_kernel,
        out_shape=jax.ShapeDtypeStruct((N, r_all, LANES), jnp.float32),
        grid=(N,),
        in_specs=[
            pl.BlockSpec((1, HW, CINP), lambda i: (i, 0, 0)),      # input rows
            pl.BlockSpec((CINP, LANES), lambda i: (0, 0)),         # stem weight
            pl.BlockSpec((1, LANES), lambda i: (0, 0)),            # stem bias
            pl.BlockSpec((r_all, HW), lambda i: (0, 0)),           # pyramid matrix
            pl.BlockSpec((LANES, LANES), lambda i: (0, 0)),        # head weight
            pl.BlockSpec((1, LANES), lambda i: (0, 0)),            # head bias
        ],
        out_specs=pl.BlockSpec((1, r_all, LANES), lambda i: (i, 0, 0)),
        compiler_params=pltpu.CompilerParams(
            dimension_semantics=("parallel",)),
        cost_estimate=pl.CostEstimate(flops=flops, transcendentals=0,
                                      bytes_accessed=bytes_accessed),
    )(x_rows, params["w_stem_p"], params["b_stem_p"], params["pyr_p"],
      params["w_heads_p"], params["b_heads_p"])


# --------------------------- JAX glue -----------------------------------------

def decode_boxes(deltas, anchors):
    # TODO(synk): decoding_box / cfg.rpn_box_encoding are external modules;
    # standard Faster-RCNN center-size decoding with dw/dh clamping is used,
    # in plain JAX so it fuses with the top-k row gather.
    aw = anchors[:, 2] - anchors[:, 0]
    ah = anchors[:, 3] - anchors[:, 1]
    ax = anchors[:, 0] + 0.5 * aw
    ay = anchors[:, 1] + 0.5 * ah
    dx, dy = deltas[:, 0], deltas[:, 1]
    dw = jnp.minimum(deltas[:, 2], BBOX_XFORM_CLIP)
    dh = jnp.minimum(deltas[:, 3], BBOX_XFORM_CLIP)
    px = dx * aw + ax
    py = dy * ah + ay
    pw = jnp.exp(dw) * aw
    ph = jnp.exp(dh) * ah
    return jnp.stack([px - 0.5 * pw, py - 0.5 * ph,
                      px + 0.5 * pw, py + 0.5 * ph], axis=-1)


def detection_model_forward(params, x_nchw, anchors, top_n=TOP_N):
    # TODO(synk): the real backbone / FPN is an external module not defined in
    # detection_model.__init__; a 1x1-conv stem + 2x2 avg-pool pyramid stands in.
    N, Cin, H, W = x_nchw.shape
    x_rows = x_nchw.transpose(0, 2, 3, 1).reshape(N, H * W, Cin)
    if Cin < CIN_PAD:
        x_rows = jnp.pad(x_rows, ((0, 0), (0, 0), (0, CIN_PAD - Cin)))
    x_rows = x_rows.astype(jnp.bfloat16)

    # --- single fused Pallas call: stem + pyramid + RPN heads -----------------
    slab = fused_forward(x_rows, params)                 # (N, R_ALL, 128) f32

    # _rerange: rows already ordered (n, level, h, w, anchor); plain reshapes.
    rpn_logit = slab[:, :, :N_CLS].reshape(-1, NUM_CLASSES)
    rpn_box = slab[:, :, N_CLS:N_CLS + N_BOX].reshape(-1, 4)

    # class_activation == 'softmax': prob + objectness (= 1 - p_background)
    # on the tiny (rows, 2) slice in plain JAX.
    rpn_prob = jax.nn.softmax(rpn_logit, axis=-1)
    objness = 1.0 - rpn_prob[:, 0]

    # _decode_and_choose_top_n_stage1: global sort over the whole batch.
    # TODO(synk): sort / top-k and NMS have no clean Pallas-TPU equivalent;
    # selection uses jax.lax.top_k in plain JAX.
    _, inds = jax.lax.top_k(objness, top_n)
    selected_boxes = rpn_box[inds]
    selected_probs = rpn_prob[inds]
    anchor_ids = inds % anchors.shape[0]
    selected_anchors = anchors[anchor_ids]
    selected_img_ids = inds // anchors.shape[0]
    decoded_boxes = decode_boxes(selected_boxes, selected_anchors)

    return (rpn_logit, rpn_box, rpn_prob, decoded_boxes,
            selected_probs, selected_img_ids, selected_anchors)


# --------------------------- params / constants --------------------------------

def init_params(key, in_ch, feat_ch=FEAT_CH,
                num_classes=NUM_CLASSES, num_anchors=NUM_ANCHORS):
    ks = jax.random.split(key, 3)

    def w(k, shape):
        return 0.1 * jax.random.normal(k, shape, jnp.float32)

    return {
        "w_stem": w(ks[0], (in_ch, feat_ch)),
        "b_stem": jnp.zeros((feat_ch,), jnp.float32),
        "w_cls": w(ks[1], (feat_ch, num_anchors * num_classes)),
        "b_cls": jnp.zeros((num_anchors * num_classes,), jnp.float32),
        "w_box": w(ks[2], (feat_ch, num_anchors * 4)),
        "b_box": jnp.zeros((num_anchors * 4,), jnp.float32),
    }


def _pool_matrix(H, W):
    """(H/2*W/2, H*W) matrix implementing 2x2 average pooling on row-major rows."""
    Hp, Wp = H // 2, W // 2
    oh, ow = jnp.meshgrid(jnp.arange(Hp), jnp.arange(Wp), indexing="ij")
    oh = oh.reshape(-1)
    ow = ow.reshape(-1)
    src = jnp.stack([(2 * oh) * W + 2 * ow, (2 * oh) * W + 2 * ow + 1,
                     (2 * oh + 1) * W + 2 * ow, (2 * oh + 1) * W + 2 * ow + 1],
                    axis=-1)                                   # (Hp*Wp, 4)
    P = jnp.zeros((Hp * Wp, H * W), jnp.float32)
    return P.at[jnp.arange(Hp * Wp)[:, None], src].set(0.25)


def prepare_params(raw, H, W):
    """Lane-dense bf16 fused weights + constant pyramid matrix for the kernel."""
    in_ch, feat_ch = raw["w_stem"].shape

    w_stem_p = jnp.zeros((CIN_PAD, LANES), jnp.float32)
    w_stem_p = w_stem_p.at[:in_ch, :feat_ch].set(raw["w_stem"])
    b_stem_p = jnp.pad(raw["b_stem"], (0, LANES - feat_ch)).reshape(1, LANES)

    w_heads = jnp.concatenate([raw["w_cls"], raw["w_box"]], axis=1)   # (32, 18)
    b_heads = jnp.concatenate([raw["b_cls"], raw["b_box"]])
    w_heads_p = jnp.pad(w_heads, ((0, LANES - feat_ch),
                                  (0, LANES - w_heads.shape[1])))
    b_heads_p = jnp.pad(b_heads, (0, LANES - b_heads.shape[0])).reshape(1, LANES)

    # Pyramid matrix: level0 = identity, level1 = pool, level2 = pool(pool).
    # All weights are exact powers of two, so the bf16 cast is lossless.
    P1 = _pool_matrix(H, W)                        # (H/2*W/2, H*W)
    P2 = _pool_matrix(H // 2, W // 2)              # (H/4*W/4, H/2*W/2)
    pyr = jnp.concatenate([jnp.eye(H * W, dtype=jnp.float32), P1, P2 @ P1],
                          axis=0)                  # (R_ALL, H*W)

    return {"w_stem_p": w_stem_p.astype(jnp.bfloat16),
            "b_stem_p": b_stem_p,
            "w_heads_p": w_heads_p.astype(jnp.bfloat16),
            "b_heads_p": b_heads_p,
            "pyr_p": pyr.astype(jnp.bfloat16)}


def make_anchors(hw_list, strides, num_anchors=NUM_ANCHORS):
    """Per-image anchors ordered (level, h, w, anchor) to match _rerange."""
    per_image = []
    for (H, W), s in zip(hw_list, strides):
        ys = (jnp.arange(H, dtype=jnp.float32) + 0.5) * s
        xs = (jnp.arange(W, dtype=jnp.float32) + 0.5) * s
        sizes = (jnp.arange(num_anchors, dtype=jnp.float32) + 1.0) * 2.0 * s
        cy, cx, sz = jnp.meshgrid(ys, xs, sizes, indexing="ij")
        a = jnp.stack([cx - sz / 2, cy - sz / 2, cx + sz / 2, cy + sz / 2], axis=-1)
        per_image.append(a.reshape(-1, 4))
    return jnp.concatenate(per_image, axis=0)


# --------------------------- main ---------------------------------------------

if __name__ == "__main__":
    key = jax.random.PRNGKey(0)
    kx, kp = jax.random.split(key)

    N, C, H, W = 2, 4, 16, 16
    x = jax.random.normal(kx, (N, C, H, W), jnp.float32)
    params = prepare_params(init_params(kp, in_ch=C), H, W)

    hw = [(H, W), (H // 2, W // 2), (H // 4, W // 4)]
    anchors = make_anchors(hw, strides=[1, 2, 4])             # (1008, 4) per image
    gt_boxes_list = [jnp.zeros((0, 5), jnp.float32)] * N      # unused (loss path)

    forward = jax.jit(detection_model_forward)
    outs = forward(params, x, anchors)
    outs = jax.block_until_ready(outs)

    # light sanity checks on shapes / values
    rpn_logit, rpn_box, rpn_prob, dec_boxes, sel_probs, sel_ids, sel_anchors = outs
    assert rpn_logit.shape == (N * anchors.shape[0], NUM_CLASSES)
    assert rpn_box.shape == (N * anchors.shape[0], 4)
    assert rpn_prob.shape == (N * anchors.shape[0], NUM_CLASSES)
    assert dec_boxes.shape == (TOP_N, 4)
    assert sel_probs.shape == (TOP_N, NUM_CLASSES)
    assert bool(jnp.all(jnp.isfinite(rpn_logit)))
    assert bool(jnp.all(jnp.isfinite(dec_boxes)))
    assert bool(jnp.all((rpn_prob >= 0.0) & (rpn_prob <= 1.0)))
    print("KERNEL_OK")
</pallas_src>

<mosaic_0001>
module attributes {stable_mosaic.version = 11 : i64} {
  func.func @_fused_forward_kernel(%arg0: i32, %arg1: memref<1x256x8xbf16, #tpu.memory_space<vmem>>, %arg2: memref<8x128xbf16, #tpu.memory_space<vmem>>, %arg3: memref<1x128xf32, #tpu.memory_space<vmem>>, %arg4: memref<336x256xbf16, #tpu.memory_space<vmem>>, %arg5: memref<128x128xbf16, #tpu.memory_space<vmem>>, %arg6: memref<1x128xf32, #tpu.memory_space<vmem>>, %arg7: memref<1x336x128xf32, #tpu.memory_space<vmem>>) attributes {dimension_semantics = [#tpu.dimension_semantics<parallel>], iteration_bounds = array<i64: 2>, scalar_prefetch = 0 : i64, scratch_operands = 0 : i64, tpu.core_type = #tpu.core_type<tc>, window_params = [{transform_indices = @transform_0, window_bounds = array<i64: 1, 256, 8>}, {pipeline_mode = #tpu.pipeline_mode<synchronous>, transform_indices = @transform_1, window_bounds = array<i64: 8, 128>}, {pipeline_mode = #tpu.pipeline_mode<synchronous>, transform_indices = @transform_2, window_bounds = array<i64: 1, 128>}, {pipeline_mode = #tpu.pipeline_mode<synchronous>, transform_indices = @transform_3, window_bounds = array<i64: 336, 256>}, {pipeline_mode = #tpu.pipeline_mode<synchronous>, transform_indices = @transform_4, window_bounds = array<i64: 128, 128>}, {pipeline_mode = #tpu.pipeline_mode<synchronous>, transform_indices = @transform_5, window_bounds = array<i64: 1, 128>}, {transform_indices = @transform_6, window_bounds = array<i64: 1, 336, 128>}]} {
    %c0 = arith.constant 0 : index
    %c0_0 = arith.constant 0 : index
    %c0_1 = arith.constant 0 : index
    %0 = vector.load %arg1[%c0, %c0_0, %c0_1] : memref<1x256x8xbf16, #tpu.memory_space<vmem>>, vector<1x256x8xbf16>
    %1 = vector.shape_cast %0 : vector<1x256x8xbf16> to vector<256x8xbf16>
    %c0_2 = arith.constant 0 : index
    %c0_3 = arith.constant 0 : index
    %2 = vector.load %arg2[%c0_2, %c0_3] : memref<8x128xbf16, #tpu.memory_space<vmem>>, vector<8x128xbf16>
    %cst = arith.constant dense<0.000000e+00> : vector<256x128xf32>
    %3 = tpu.matmul %1, %2, %cst {dimension_numbers = #tpu.dot_dimension_numbers<[1], [0], [0], [1], [0, 0, 1, 1], [], []>} : vector<256x8xbf16>, vector<8x128xbf16>, vector<256x128xf32> -> vector<256x128xf32>
    %c0_4 = arith.constant 0 : index
    %c0_5 = arith.constant 0 : index
    %4 = vector.load %arg3[%c0_4, %c0_5] : memref<1x128xf32, #tpu.memory_space<vmem>>, vector<1x128xf32>
    %5 = vector.broadcast %4 : vector<1x128xf32> to vector<256x128xf32>
    %6 = arith.addf %3, %5 : vector<256x128xf32>
    %cst_6 = arith.constant 0.000000e+00 : f32
    %7 = vector.broadcast %cst_6 : f32 to vector<256x128xf32>
    %8 = arith.maximumf %6, %7 : vector<256x128xf32>
    %c0_7 = arith.constant 0 : index
    %c0_8 = arith.constant 0 : index
    %9 = vector.load %arg4[%c0_7, %c0_8] : memref<336x256xbf16, #tpu.memory_space<vmem>>, vector<336x256xbf16>
    %10 = arith.truncf %8 : vector<256x128xf32> to vector<256x128xbf16>
    %cst_9 = arith.constant dense<0.000000e+00> : vector<336x128xf32>
    %11 = tpu.matmul %9, %10, %cst_9 {dimension_numbers = #tpu.dot_dimension_numbers<[1], [0], [0], [1], [0, 0, 1, 1], [], []>} : vector<336x256xbf16>, vector<256x128xbf16>, vector<336x128xf32> -> vector<336x128xf32>
    %12 = arith.truncf %11 : vector<336x128xf32> to vector<336x128xbf16>
    %c0_10 = arith.constant 0 : index
    %c0_11 = arith.constant 0 : index
    %13 = vector.load %arg5[%c0_10, %c0_11] : memref<128x128xbf16, #tpu.memory_space<vmem>>, vector<128x128xbf16>
    %cst_12 = arith.constant dense<0.000000e+00> : vector<336x128xf32>
    %14 = tpu.matmul %12, %13, %cst_12 {dimension_numbers = #tpu.dot_dimension_numbers<[1], [0], [0], [1], [0, 0, 1, 1], [], []>} : vector<336x128xbf16>, vector<128x128xbf16>, vector<336x128xf32> -> vector<336x128xf32>
    %c0_13 = arith.constant 0 : index
    %c0_14 = arith.constant 0 : index
    %15 = vector.load %arg6[%c0_13, %c0_14] : memref<1x128xf32, #tpu.memory_space<vmem>>, vector<1x128xf32>
    %16 = vector.broadcast %15 : vector<1x128xf32> to vector<336x128xf32>
    %17 = arith.addf %14, %16 : vector<336x128xf32>
    %c0_15 = arith.constant 0 : index
    %c0_16 = arith.constant 0 : index
    %c0_17 = arith.constant 0 : index
    %18 = vector.load %arg7[%c0_15, %c0_16, %c0_17] : memref<1x336x128xf32, #tpu.memory_space<vmem>>, vector<1x336x128xf32>
    %19 = vector.shape_cast %18 : vector<1x336x128xf32> to vector<336x128xf32>
    %20 = vector.shape_cast %17 : vector<336x128xf32> to vector<1x336x128xf32>
    tpu.vector_store %arg7[%c0_15, %c0_16, %c0_17], %20 {strides = array<i32>} : memref<1x336x128xf32, #tpu.memory_space<vmem>>, vector<1x336x128xf32>,
    return
  }
  func.func @transform_0(%arg0: i32) -> (i32, i32, i32) {
    %c0_i32 = arith.constant 0 : i32
    %c0_i32_0 = arith.constant 0 : i32
    %c0_i32_1 = arith.constant 0 : i32
    return %arg0, %c0_i32, %c0_i32_0 : i32, i32, i32
  }
  func.func @transform_1(%arg0: i32) -> (i32, i32) {
    %c0_i32 = arith.constant 0 : i32
    %c0_i32_0 = arith.constant 0 : i32
    %c0_i32_1 = arith.constant 0 : i32
    return %c0_i32, %c0_i32_0 : i32, i32
  }
  func.func @transform_2(%arg0: i32) -> (i32, i32) {
    %c0_i32 = arith.constant 0 : i32
    %c0_i32_0 = arith.constant 0 : i32
    %c0_i32_1 = arith.constant 0 : i32
    return %c0_i32, %c0_i32_0 : i32, i32
  }
  func.func @transform_3(%arg0: i32) -> (i32, i32) {
    %c0_i32 = arith.constant 0 : i32
    %c0_i32_0 = arith.constant 0 : i32
    %c0_i32_1 = arith.constant 0 : i32
    return %c0_i32, %c0_i32_0 : i32, i32
  }
  func.func @transform_4(%arg0: i32) -> (i32, i32) {
    %c0_i32 = arith.constant 0 : i32
    %c0_i32_0 = arith.constant 0 : i32
    %c0_i32_1 = arith.constant 0 : i32
    return %c0_i32, %c0_i32_0 : i32, i32
  }
  func.func @transform_5(%arg0: i32) -> (i32, i32) {
    %c0_i32 = arith.constant 0 : i32
    %c0_i32_0 = arith.constant 0 : i32
    %c0_i32_1 = arith.constant 0 : i32
    return %c0_i32, %c0_i32_0 : i32, i32
  }
  func.func @transform_6(%arg0: i32) -> (i32, i32, i32) {
    %c0_i32 = arith.constant 0 : i32
    %c0_i32_0 = arith.constant 0 : i32
    %c0_i32_1 = arith.constant 0 : i32
    return %arg0, %c0_i32, %c0_i32_0 : i32, i32, i32
  }
}

</mosaic_0001>

<llo_original>
// kernel: detection_model_forward.1
$region0: #{detection_model_forward.1}
  #allocation0 [shape = 'u32[]', space=smem, size = 0x4, offset = 0x4, fixed_abs, tag = 'smem constant byte address 0x4 - core index']
  #allocation1 [shape = 'u32[144,128]{1,0:T(1,128)}', space=vmem, size = 0x12000, scoped, tag = 'internal scratch']
  %s0 = inlined_call_operand.vmem [shape: bf16[2,256,8], index: 0, kind: input, shape index: {}]
  %s1 = inlined_call_operand.vmem [shape: bf16[8,128], index: 1, kind: input, shape index: {}]
  %s2 = inlined_call_operand.vmem [shape: f32[1,128], index: 2, kind: input, shape index: {}]
  %s3 = inlined_call_operand.vmem [shape: bf16[336,256], index: 3, kind: input, shape index: {}]
  %s4 = inlined_call_operand.vmem [shape: bf16[128,128], index: 4, kind: input, shape index: {}]
  %s5 = inlined_call_operand.vmem [shape: f32[1,128], index: 5, kind: input, shape index: {}]
  %s6 = inlined_call_operand.vmem [shape: f32[2,336,128], index: 6, kind: output, shape index: {}]
  %s7 = sld [smem:[#allocation0]]
  $region57: #{detection_model_forward.1} parent=0
    _
  %s9 = ssub.s32 1, %s7
  %s10 = scalar_select 0, %s9, %s7
  loop: start=0, step=1, limit=4
  $region2: #{detection_model_forward.1} parent=0 // loop_pre_header
    _
  $region3: #{detection_model_forward.1} parent=0 // loop_header
    %s12 = sphi 0, %s16
    %p13 = scmp.ge.s32.totalorder %s12, 4
    %s22 = sphi 0, %s24
    %s25 = sphi 0, %s22
    %s26 = sphi 0, %s25
    %s42 = sphi 0, %s26
    %s46 = sphi 0, %s46
    %s48 = sphi 0, %s46
    %s49 = sphi 0, %s48
    %s63 = sphi 0, %s49
    %s67 = sphi 0, %s67
    %s69 = sphi 0, %s67
    %s70 = sphi 0, %s69
    %s84 = sphi 0, %s70
    %s88 = sphi 0, %s88
    %s90 = sphi 0, %s88
    %s91 = sphi 0, %s90
    %s105 = sphi 0, %s91
    %s109 = sphi 0, %s109
    %s111 = sphi 0, %s109
    %s112 = sphi 0, %s111
    %s126 = sphi 0, %s112
    %s130 = sphi 0, %s130
    %s132 = sphi 0, %s130
    %s133 = sphi 0, %s132
    %s147 = sphi 0, %s133
    %s153 = sphi 0, %s155
    %s156 = sphi 0, %s153
    %s157 = sphi 0, %s156
    %s173 = sphi 0, %s157
  $region4: #{detection_model_forward.1} parent=0 // loop_header_branch
    %15 = sbr.rel (%p13) target = $region8
  $region5: #{detection_model_forward.1} parent=0 // loop_body
    %s17 = ssub.s32 %s12, 1
    %s18 = ssub.s32 %s12, 2
    %s19 = sadd.s32 %s12, 1
    %s20 = ssub.s32 %s12, %s19
    %p21 = scmp.eq.s32.totalorder %s20, 0
    %s23 = sadd.s32 %s22, 1
    %s24 = scalar_select %p21, %s22, %s23
    %p27 = pneg %p21
    %p28 = scmp.eq.s32.totalorder %s12, 1
    %p29 = por %p27, %p28
    %p30 = scmp.ne.s32.totalorder %s22, %s25
    %p31 = scmp.eq.s32.totalorder %s12, 0
    %p32 = por %p30, %p31
    %p33 = scmp.ne.s32.totalorder %s22, %s25
    %p34 = scmp.eq.s32.totalorder %s17, 1
    %p35 = por %p33, %p34
    %p36 = scmp.ne.s32.totalorder %s25, %s26
    %p37 = scmp.eq.s32.totalorder %s17, 0
    %p38 = por %p36, %p37
    %p39 = scmp.ne.s32.totalorder %s25, %s26
    %p40 = scmp.eq.s32.totalorder %s18, 1
    %p41 = por %p39, %p40
    %p43 = scmp.ne.s32.totalorder %s26, %s42
    %p44 = scmp.eq.s32.totalorder %s18, 0
    %p45 = por %p43, %p44
    %s47 = sadd.s32 %s46, 1
    %p50 = scmp.eq.s32.totalorder %s12, 1
    %p51 = scmp.ne.s32.totalorder %s46, %s48
    %p52 = scmp.eq.s32.totalorder %s12, 0
    %p53 = por %p51, %p52
    %p54 = scmp.ne.s32.totalorder %s46, %s48
    %p55 = scmp.eq.s32.totalorder %s17, 1
    %p56 = por %p54, %p55
    %p57 = scmp.ne.s32.totalorder %s48, %s49
    %p58 = scmp.eq.s32.totalorder %s17, 0
    %p59 = por %p57, %p58
    %p60 = scmp.ne.s32.totalorder %s48, %s49
    %p61 = scmp.eq.s32.totalorder %s18, 1
    %p62 = por %p60, %p61
    %p64 = scmp.ne.s32.totalorder %s49, %s63
    %p65 = scmp.eq.s32.totalorder %s18, 0
    %p66 = por %p64, %p65
    %s68 = sadd.s32 %s67, 1
    %p71 = scmp.eq.s32.totalorder %s12, 1
    %p72 = scmp.ne.s32.totalorder %s67, %s69
    %p73 = scmp.eq.s32.totalorder %s12, 0
    %p74 = por %p72, %p73
    %p75 = scmp.ne.s32.totalorder %s67, %s69
    %p76 = scmp.eq.s32.totalorder %s17, 1
    %p77 = por %p75, %p76
    %p78 = scmp.ne.s32.totalorder %s69, %s70
    %p79 = scmp.eq.s32.totalorder %s17, 0
    %p80 = por %p78, %p79
    %p81 = scmp.ne.s32.totalorder %s69, %s70
    %p82 = scmp.eq.s32.totalorder %s18, 1
    %p83 = por %p81, %p82
    %p85 = scmp.ne.s32.totalorder %s70, %s84
    %p86 = scmp.eq.s32.totalorder %s18, 0
    %p87 = por %p85, %p86
    %s89 = sadd.s32 %s88, 1
    %p92 = scmp.eq.s32.totalorder %s12, 1
    %p93 = scmp.ne.s32.totalorder %s88, %s90
    %p94 = scmp.eq.s32.totalorder %s12, 0
    %p95 = por %p93, %p94
    %p96 = scmp.ne.s32.totalorder %s88, %s90
    %p97 = scmp.eq.s32.totalorder %s17, 1
    %p98 = por %p96, %p97
    %p99 = scmp.ne.s32.totalorder %s90, %s91
    %p100 = scmp.eq.s32.totalorder %s17, 0
    %p101 = por %p99, %p100
    %p102 = scmp.ne.s32.totalorder %s90, %s91
    %p103 = scmp.eq.s32.totalorder %s18, 1
    %p104 = por %p102, %p103
    %p106 = scmp.ne.s32.totalorder %s91, %s105
    %p107 = scmp.eq.s32.totalorder %s18, 0
    %p108 = por %p106, %p107
    %s110 = sadd.s32 %s109, 1
    %p113 = scmp.eq.s32.totalorder %s12, 1
    %p114 = scmp.ne.s32.totalorder %s109, %s111
    %p115 = scmp.eq.s32.totalorder %s12, 0
    %p116 = por %p114, %p115
    %p117 = scmp.ne.s32.totalorder %s109, %s111
    %p118 = scmp.eq.s32.totalorder %s17, 1
    %p119 = por %p117, %p118
    %p120 = scmp.ne.s32.totalorder %s111, %s112
    %p121 = scmp.eq.s32.totalorder %s17, 0
    %p122 = por %p120, %p121
    %p123 = scmp.ne.s32.totalorder %s111, %s112
    %p124 = scmp.eq.s32.totalorder %s18, 1
    %p125 = por %p123, %p124
    %p127 = scmp.ne.s32.totalorder %s112, %s126
    %p128 = scmp.eq.s32.totalorder %s18, 0
    %p129 = por %p127, %p128
    %s131 = sadd.s32 %s130, 1
    %p134 = scmp.eq.s32.totalorder %s12, 1
    %p135 = scmp.ne.s32.totalorder %s130, %s132
    %p136 = scmp.eq.s32.totalorder %s12, 0
    %p137 = por %p135, %p136
    %p138 = scmp.ne.s32.totalorder %s130, %s132
    %p139 = scmp.eq.s32.totalorder %s17, 1
    %p140 = por %p138, %p139
    %p141 = scmp.ne.s32.totalorder %s132, %s133
    %p142 = scmp.eq.s32.totalorder %s17, 0
    %p143 = por %p141, %p142
    %p144 = scmp.ne.s32.totalorder %s132, %s133
    %p145 = scmp.eq.s32.totalorder %s18, 1
    %p146 = por %p144, %p145
    %p148 = scmp.ne.s32.totalorder %s133, %s147
    %p149 = scmp.eq.s32.totalorder %s18, 0
    %p150 = por %p148, %p149
    %s151 = ssub.s32 %s12, %s19
    %p152 = scmp.eq.s32.totalorder %s151, 0
    %s154 = sadd.s32 %s153, 1
    %s155 = scalar_select %p152, %s153, %s154
    %p158 = pneg %p152
    %p159 = scmp.eq.s32.totalorder %s12, 1
    %p160 = por %p158, %p159
    %p161 = scmp.ne.s32.totalorder %s153, %s156
    %p162 = scmp.eq.s32.totalorder %s12, 0
    %p163 = por %p161, %p162
    %p164 = scmp.ne.s32.totalorder %s153, %s156
    %p165 = scmp.eq.s32.totalorder %s17, 1
    %p166 = por %p164, %p165
    %p167 = scmp.ne.s32.totalorder %s156, %s157
    %p168 = scmp.eq.s32.totalorder %s17, 0
    %p169 = por %p167, %p168
    %p170 = scmp.ne.s32.totalorder %s156, %s157
    %p171 = scmp.eq.s32.totalorder %s18, 1
    %p172 = por %p170, %p171
    %p174 = scmp.ne.s32.totalorder %s157, %s173
    %p175 = scmp.eq.s32.totalorder %s18, 0
    %p176 = por %p174, %p175
    %p177 = scmp.le.s32.totalorder 1, %s12
    %p178 = scmp.lt.s32.totalorder %s12, 3
    %p179 = pnand %p177, %p178
    %p180 = pneg %p179
    // Predicated region
    $region9: #{detection_model_forward.1} parent=5 // pred_check
      _
    $region10: #{detection_model_forward.1} parent=5 // pred_check_branch
      %182 = sbr.rel (%p179) target = $region12
    $region11: #{detection_model_forward.1} parent=5 // pred_region
      %s183 = ssub.s32 %s12, 1
      // Predicated region
      $region13: #{detection_model_forward.1} parent=11 // pred_check
        %p184 = pneg %p59
      $region14: #{detection_model_forward.1} parent=11 // pred_check_branch
        %186 = sbr.rel (%p184) target = $region16
      $region15: #{detection_model_forward.1} parent=11 // pred_region
        _
      $region16: #{detection_model_forward.1} parent=11 // pred_fallthru
        _
      // Predicated region
      $region17: #{detection_model_forward.1} parent=11 // pred_check
        %p187 = pneg %p80
      $region18: #{detection_model_forward.1} parent=11 // pred_check_branch
        %189 = sbr.rel (%p187) target = $region20
      $region19: #{detection_model_forward.1} parent=11 // pred_region
        _
      $region20: #{detection_model_forward.1} parent=11 // pred_fallthru
        _
      // Predicated region
      $region21: #{detection_model_forward.1} parent=11 // pred_check
        %p190 = pneg %p101
      $region22: #{detection_model_forward.1} parent=11 // pred_check_branch
        %192 = sbr.rel (%p190) target = $region24
      $region23: #{detection_model_forward.1} parent=11 // pred_region
        _
      $region24: #{detection_model_forward.1} parent=11 // pred_fallthru
        _
      // Predicated region
      $region25: #{detection_model_forward.1} parent=11 // pred_check
        %p193 = pneg %p122
      $region26: #{detection_model_forward.1} parent=11 // pred_check_branch
        %195 = sbr.rel (%p193) target = $region28
      $region27: #{detection_model_forward.1} parent=11 // pred_region
        _
      $region28: #{detection_model_forward.1} parent=11 // pred_fallthru
        _
      // Predicated region
      $region29: #{detection_model_forward.1} parent=11 // pred_check
        %p196 = pneg %p143
      $region30: #{detection_model_forward.1} parent=11 // pred_check_branch
        %198 = sbr.rel (%p196) target = $region32
      $region31: #{detection_model_forward.1} parent=11 // pred_region
        _
      $region32: #{detection_model_forward.1} parent=11 // pred_fallthru
        _
    $region12: #{detection_model_forward.1} parent=5 // pred_fallthru
      _
    %p199 = scmp.lt.s32.totalorder %s12, 2
    // Predicated region
    $region33: #{detection_model_forward.1} parent=5 // pred_check
      %p200 = pneg %p199
    $region34: #{detection_model_forward.1} parent=5 // pred_check_branch
      %202 = sbr.rel (%p200) target = $region36
    $region35: #{detection_model_forward.1} parent=5 // pred_region
      // Predicated region
      $region37: #{detection_model_forward.1} parent=35 // pred_check
        %p203 = pneg %p32
      $region38: #{detection_model_forward.1} parent=35 // pred_check_branch
        %205 = sbr.rel (%p203) target = $region40
      $region39: #{detection_model_forward.1} parent=35 // pred_region
        %p206 = scmp.lt.s32.totalorder %s12, 1
        %s207 = scalar_select %p206, %s12, 1
        %s208 = smul.addr %s207, 32
        %s209 = smul.addr %s208, 4
        %s210 = scalar_lea.vmem %s0, %s209
      $region40: #{detection_model_forward.1} parent=35 // pred_fallthru
        _
    $region36: #{detection_model_forward.1} parent=5 // pred_fallthru
      _
    %p211 = scmp.le.s32.totalorder 1, %s12
    %p212 = scmp.lt.s32.totalorder %s12, 3
    %p213 = pnand %p211, %p212
    %p214 = pneg %p213
    // Predicated region
    $region41: #{detection_model_forward.1} parent=5 // pred_check
      _
    $region42: #{detection_model_forward.1} parent=5 // pred_check_branch
      %216 = sbr.rel (%p213) target = $region44
    $region43: #{detection_model_forward.1} parent=5 // pred_region
      %s217 = ssub.s32 %s12, 1
      %p218 = scmp.lt.s32.totalorder %s17, 1
      %s219 = scalar_select %p218, %s17, 1
      %s220 = smul.addr %s219, 32
      %s221 = smul.addr %s220, 4
      %s222 = scalar_lea.vmem %s0, %s221
      %p223 = pneg %p38
      %p224 = pneg %p35
      %p225 = pneg %p59
      %p226 = pneg %p56
      %p227 = pneg %p80
      %p228 = pneg %p77
      %p229 = pneg %p101
      %p230 = pneg %p98
      %p231 = pneg %p122
      %p232 = pneg %p119
      %p233 = pneg %p143
      %p234 = pneg %p140
      %p235 = pneg %p169
      %p236 = pneg %p166
      %p237 = scmp.lt.s32.totalorder %s17, 1
      %s238 = scalar_select %p237, %s17, 1
      %s239 = smul.addr %s238, 42
      %s240 = smul.addr %s239, 8
      %s241 = scalar_lea.vmem %s6, %s240
      %p242 = scmp.lt.s32.totalorder %s17, 1
      %s243 = scalar_select %p242, %s17, 1
      %s244 = smul.addr %s243, 32
      %s245 = smul.addr %s244, 4
      %s246 = scalar_lea.vmem %s0, %s245
      %p247 = scmp.lt.s32.totalorder %s17, 1
      %s248 = scalar_select %p247, %s17, 1
      %s249 = smul.addr %s248, 42
      %s250 = smul.addr %s249, 8
      %s251 = scalar_lea.vmem %s6, %s250
      %v253 = vld [vmem:[%s246] sm:$0xf]
      %v254 = vld [vmem:[%s246 + $0x4] sm:$0xf]
      %v255 = vld [vmem:[%s246 + $0x8] sm:$0xf]
      %v256 = vld [vmem:[%s246 + $0xc] sm:$0xf]
      %v257 = vld [vmem:[%s246 + $0x10] sm:$0xf]
      %v258 = vld [vmem:[%s246 + $0x14] sm:$0xf]
      %v259 = vld [vmem:[%s246 + $0x18] sm:$0xf]
      %v260 = vld [vmem:[%s246 + $0x1c] sm:$0xf]
      %v261 = vld [vmem:[%s246 + $0x20] sm:$0xf]
      %v262 = vld [vmem:[%s246 + $0x24] sm:$0xf]
      %v263 = vld [vmem:[%s246 + $0x28] sm:$0xf]
      %v264 = vld [vmem:[%s246 + $0x2c] sm:$0xf]
      %v265 = vld [vmem:[%s246 + $0x30] sm:$0xf]
      %v266 = vld [vmem:[%s246 + $0x34] sm:$0xf]
      %v267 = vld [vmem:[%s246 + $0x38] sm:$0xf]
      %v268 = vld [vmem:[%s246 + $0x3c] sm:$0xf]
      %v269 = vld [vmem:[%s246 + $0x40] sm:$0xf]
      %v270 = vld [vmem:[%s246 + $0x44] sm:$0xf]
      %v271 = vld [vmem:[%s246 + $0x48] sm:$0xf]
      %v272 = vld [vmem:[%s246 + $0x4c] sm:$0xf]
      %v273 = vld [vmem:[%s246 + $0x50] sm:$0xf]
      %v274 = vld [vmem:[%s246 + $0x54] sm:$0xf]
      %v275 = vld [vmem:[%s246 + $0x58] sm:$0xf]
      %v276 = vld [vmem:[%s246 + $0x5c] sm:$0xf]
      %v277 = vld [vmem:[%s246 + $0x60] sm:$0xf]
      %v278 = vld [vmem:[%s246 + $0x64] sm:$0xf]
      %v279 = vld [vmem:[%s246 + $0x68] sm:$0xf]
      %v280 = vld [vmem:[%s246 + $0x6c] sm:$0xf]
      %v281 = vld [vmem:[%s246 + $0x70] sm:$0xf]
      %v282 = vld [vmem:[%s246 + $0x74] sm:$0xf]
      %v283 = vld [vmem:[%s246 + $0x78] sm:$0xf]
      %v284 = vld [vmem:[%s246 + $0x7c] sm:$0xf]
      %v285 = vld [vmem:[%s1] sm:$0xf]
      %v286 = vld [vmem:[%s2] sm:$0x1]
      %v288 = vlaneseq
      %v289 = vshrl.u32 %v288, 7
      %v290 = vsub.s32 0, %v289
      %v291 = vrot.slane %v286, %v290
      %v325 = vunpack.c.l.b16 %v253
      %v326 = vunpack.c.l.b16 %v254
      %v327 = vunpack.c.l.b16 %v255
      %v328 = vunpack.c.l.b16 %v256
      %v329 = vunpack.c.l.b16 %v257
      %v330 = vunpack.c.l.b16 %v258
      %v331 = vunpack.c.l.b16 %v259
      %v332 = vunpack.c.l.b16 %v260
      %v333 = vunpack.c.l.b16 %v261
      %v334 = vunpack.c.l.b16 %v262
      %v335 = vunpack.c.l.b16 %v263
      %v336 = vunpack.c.l.b16 %v264
      %v337 = vunpack.c.l.b16 %v265
      %v338 = vunpack.c.l.b16 %v266
      %v339 = vunpack.c.l.b16 %v267
      %v340 = vunpack.c.l.b16 %v268
      %v341 = vunpack.c.l.b16 %v269
      %v342 = vunpack.c.l.b16 %v270
      %v343 = vunpack.c.l.b16 %v271
      %v344 = vunpack.c.l.b16 %v272
      %v345 = vunpack.c.l.b16 %v273
      %v346 = vunpack.c.l.b16 %v274
      %v347 = vunpack.c.l.b16 %v275
      %v348 = vunpack.c.l.b16 %v276
      %v349 = vunpack.c.l.b16 %v277
      %v350 = vunpack.c.l.b16 %v278
      %v351 = vunpack.c.l.b16 %v279
      %v352 = vunpack.c.l.b16 %v280
      %v353 = vunpack.c.l.b16 %v281
      %v354 = vunpack.c.l.b16 %v282
      %v355 = vunpack.c.l.b16 %v283
      %v356 = vunpack.c.l.b16 %v284
      %v357 = vpack.c.b16 %v326, %v325
      %v358 = vpack.c.b16 %v328, %v327
      %v359 = vpack.c.b16 %v330, %v329
      %v360 = vpack.c.b16 %v332, %v331
      %v361 = vpack.c.b16 %v334, %v333
      %v362 = vpack.c.b16 %v336, %v335
      %v363 = vpack.c.b16 %v338, %v337
      %v364 = vpack.c.b16 %v340, %v339
      %v365 = vpack.c.b16 %v342, %v341
      %v366 = vpack.c.b16 %v344, %v343
      %v367 = vpack.c.b16 %v346, %v345
      %v368 = vpack.c.b16 %v348, %v347
      %v369 = vpack.c.b16 %v350, %v349
      %v370 = vpack.c.b16 %v352, %v351
      %v371 = vpack.c.b16 %v354, %v353
      %v372 = vpack.c.b16 %v356, %v355
      %vm373 = vcmask 64512
      %v375 = vsel %vm373, %v357, 0
      %v378 = vsel %vm373, %v358, 0
      %v381 = vsel %vm373, %v359, 0
      %v384 = vsel %vm373, %v360, 0
      %v387 = vsel %vm373, %v361, 0
      %v390 = vsel %vm373, %v362, 0
      %v393 = vsel %vm373, %v363, 0
      %v396 = vsel %vm373, %v364, 0
      %v399 = vsel %vm373, %v365, 0
      %v402 = vsel %vm373, %v366, 0
      %v405 = vsel %vm373, %v367, 0
      %v408 = vsel %vm373, %v368, 0
      %v411 = vsel %vm373, %v369, 0
      %v414 = vsel %vm373, %v370, 0
      %v417 = vsel %vm373, %v371, 0
      %v420 = vsel %vm373, %v372, 0
      %vm422 = vcmask 1043456
      %v424 = vsel %vm422, %v285, 0
      %426 = vmatprep.subr.bf16.mxu0 0
      %427 = vmatpush1.bf16.msra.mxu0 %v424
      %428 = vmatprep.subr.bf16.mxu0 0
      %429 = vmatpush1.bf16.msra.mxu0 0
      %430 = vmatprep.subr.bf16.mxu0 0
      %431 = vmatpush1.bf16.msra.mxu0 0
      %432 = vmatprep.subr.bf16.mxu0 0
      %433 = vmatpush1.bf16.msra.mxu0 0
      %434 = vmatprep.subr.bf16.mxu0 0
      %435 = vmatpush1.bf16.msra.mxu0 0
      %436 = vmatprep.subr.bf16.mxu0 0
      %437 = vmatpush1.bf16.msra.mxu0 0
      %438 = vmatprep.subr.bf16.mxu0 0
      %439 = vmatpush1.bf16.msra.mxu0 0
      %440 = vmatprep.subr.bf16.mxu0 0
      %441 = vmatpush1.bf16.msra.mxu0 0
      %442 = vmatprep.subr.bf16.mxu0 0
      %443 = vmatpush1.bf16.msra.mxu0 0
      %444 = vmatprep.subr.bf16.mxu0 0
      %445 = vmatpush1.bf16.msra.mxu0 0
      %446 = vmatprep.subr.bf16.mxu0 0
      %447 = vmatpush1.bf16.msra.mxu0 0
      %448 = vmatprep.subr.bf16.mxu0 0
      %449 = vmatpush1.bf16.msra.mxu0 0
      %450 = vmatprep.subr.bf16.mxu0 0
      %451 = vmatpush1.bf16.msra.mxu0 0
      %452 = vmatprep.subr.bf16.mxu0 0
      %453 = vmatpush1.bf16.msra.mxu0 0
      %454 = vmatprep.subr.bf16.mxu0 0
      %455 = vmatpush1.bf16.msra.mxu0 0
      %456 = vmatprep.subr.bf16.mxu0 0
      %457 = vmatpush1.bf16.msra.mxu0 0
      %458 = vmatprep.mubr.bf16.mxu0 0
      %459 = vmatmul.mubr.bf16.gmra.mrb[0].mxu0 %v375
      %v460 = vpop.f32.mrb[0].mxu0
      %v461 = vadd.f32 %v291, %v460
      %v462 = vpop.f32.mrb[0].mxu0
      %v463 = vpop.f32.mrb[0].mxu0
      %v464 = vadd.f32 %v291, %v463
      %v465 = vpop.f32.mrb[0].mxu0
      %466 = vmatprep.mubr.bf16.mxu0 0
      %467 = vmatmul.mubr.bf16.gmra.mrb[0].mxu0 %v378
      %v468 = vpop.f32.mrb[0].mxu0
      %v469 = vadd.f32 %v291, %v468
      %v470 = vpop.f32.mrb[0].mxu0
      %v471 = vpop.f32.mrb[0].mxu0
      %v472 = vadd.f32 %v291, %v471
      %v473 = vpop.f32.mrb[0].mxu0
      %474 = vmatprep.mubr.bf16.mxu0 0
      %475 = vmatmul.mubr.bf16.gmra.mrb[0].mxu0 %v381
      %v476 = vpop.f32.mrb[0].mxu0
      %v477 = vadd.f32 %v291, %v476
      %v478 = vpop.f32.mrb[0].mxu0
      %v479 = vpop.f32.mrb[0].mxu0
      %v480 = vadd.f32 %v291, %v479
      %v481 = vpop.f32.mrb[0].mxu0
      %482 = vmatprep.mubr.bf16.mxu0 0
      %483 = vmatmul.mubr.bf16.gmra.mrb[0].mxu0 %v384
      %v484 = vpop.f32.mrb[0].mxu0
      %v485 = vadd.f32 %v291, %v484
      %v486 = vpop.f32.mrb[0].mxu0
      %v487 = vpop.f32.mrb[0].mxu0
      %v488 = vadd.f32 %v291, %v487
      %v489 = vpop.f32.mrb[0].mxu0
      %490 = vmatprep.mubr.bf16.mxu0 0
      %491 = vmatmul.mubr.bf16.gmra.mrb[0].mxu0 %v387
      %v492 = vpop.f32.mrb[0].mxu0
      %v493 = vadd.f32 %v291, %v492
      %v494 = vpop.f32.mrb[0].mxu0
      %v495 = vpop.f32.mrb[0].mxu0
      %v496 = vadd.f32 %v291, %v495
      %v497 = vpop.f32.mrb[0].mxu0
      %498 = vmatprep.mubr.bf16.mxu0 0
      %499 = vmatmul.mubr.bf16.gmra.mrb[0].mxu0 %v390
      %v500 = vpop.f32.mrb[0].mxu0
      %v501 = vadd.f32 %v291, %v500
      %v502 = vpop.f32.mrb[0].mxu0
      %v503 = vpop.f32.mrb[0].mxu0
      %v504 = vadd.f32 %v291, %v503
      %v505 = vpop.f32.mrb[0].mxu0
      %506 = vmatprep.mubr.bf16.mxu0 0
      %507 = vmatmul.mubr.bf16.gmra.mrb[0].mxu0 %v393
      %v508 = vpop.f32.mrb[0].mxu0
      %v509 = vadd.f32 %v291, %v508
      %v510 = vpop.f32.mrb[0].mxu0
      %v511 = vpop.f32.mrb[0].mxu0
      %v512 = vadd.f32 %v291, %v511
      %v513 = vpop.f32.mrb[0].mxu0
      %514 = vmatprep.mubr.bf16.mxu0 0
      %515 = vmatmul.mubr.bf16.gmra.mrb[0].mxu0 %v396
      %v516 = vpop.f32.mrb[0].mxu0
      %v517 = vadd.f32 %v291, %v516
      %v518 = vpop.f32.mrb[0].mxu0
      %v519 = vpop.f32.mrb[0].mxu0
      %v520 = vadd.f32 %v291, %v519
      %v521 = vpop.f32.mrb[0].mxu0
      %522 = vmatprep.mubr.bf16.mxu0 0
      %523 = vmatmul.mubr.bf16.gmra.mrb[0].mxu0 %v399
      %v524 = vpop.f32.mrb[0].mxu0
      %v525 = vadd.f32 %v291, %v524
      %v526 = vpop.f32.mrb[0].mxu0
      %v527 = vpop.f32.mrb[0].mxu0
      %v528 = vadd.f32 %v291, %v527
      %v529 = vpop.f32.mrb[0].mxu0
      %530 = vmatprep.mubr.bf16.mxu0 0
      %531 = vmatmul.mubr.bf16.gmra.mrb[0].mxu0 %v402
      %v532 = vpop.f32.mrb[0].mxu0
      %v533 = vadd.f32 %v291, %v532
      %v534 = vpop.f32.mrb[0].mxu0
      %v535 = vpop.f32.mrb[0].mxu0
      %v536 = vadd.f32 %v291, %v535
      %v537 = vpop.f32.mrb[0].mxu0
      %538 = vmatprep.mubr.bf16.mxu0 0
      %539 = vmatmul.mubr.bf16.gmra.mrb[0].mxu0 %v405
      %v540 = vpop.f32.mrb[0].mxu0
      %v541 = vadd.f32 %v291, %v540
      %v542 = vpop.f32.mrb[0].mxu0
      %v543 = vpop.f32.mrb[0].mxu0
      %v544 = vadd.f32 %v291, %v543
      %v545 = vpop.f32.mrb[0].mxu0
      %546 = vmatprep.mubr.bf16.mxu0 0
      %547 = vmatmul.mubr.bf16.gmra.mrb[0].mxu0 %v408
      %v548 = vpop.f32.mrb[0].mxu0
      %v549 = vadd.f32 %v291, %v548
      %v550 = vpop.f32.mrb[0].mxu0
      %v551 = vpop.f32.mrb[0].mxu0
      %v552 = vadd.f32 %v291, %v551
      %v553 = vpop.f32.mrb[0].mxu0
      %554 = vmatprep.mubr.bf16.mxu0 0
      %555 = vmatmul.mubr.bf16.gmra.mrb[0].mxu0 %v411
      %v556 = vpop.f32.mrb[0].mxu0
      %v557 = vadd.f32 %v291, %v556
      %v558 = vpop.f32.mrb[0].mxu0
      %v559 = vpop.f32.mrb[0].mxu0
      %v560 = vadd.f32 %v291, %v559
      %v561 = vpop.f32.mrb[0].mxu0
      %562 = vmatprep.mubr.bf16.mxu0 0
      %563 = vmatmul.mubr.bf16.gmra.mrb[0].mxu0 %v414
      %v564 = vpop.f32.mrb[0].mxu0
      %v565 = vadd.f32 %v291, %v564
      %v566 = vpop.f32.mrb[0].mxu0
      %v567 = vpop.f32.mrb[0].mxu0
      %v568 = vadd.f32 %v291, %v567
      %v569 = vpop.f32.mrb[0].mxu0
      %570 = vmatprep.mubr.bf16.mxu0 0
      %571 = vmatmul.mubr.bf16.gmra.mrb[0].mxu0 %v417
      %v572 = vpop.f32.mrb[0].mxu0
      %v573 = vadd.f32 %v291, %v572
      %v574 = vpop.f32.mrb[0].mxu0
      %v575 = vpop.f32.mrb[0].mxu0
      %v576 = vadd.f32 %v291, %v575
      %v577 = vpop.f32.mrb[0].mxu0
      %578 = vmatprep.mubr.bf16.mxu0 0
      %579 = vmatmul.mubr.bf16.gmra.mrb[0].mxu0 %v420
      %v580 = vpop.f32.mrb[0].mxu0
      %v581 = vadd.f32 %v291, %v580
      %v582 = vpop.f32.mrb[0].mxu0
      %v583 = vpop.f32.mrb[0].mxu0
      %v584 = vadd.f32 %v291, %v583
      %v585 = vpop.f32.mrb[0].mxu0
      %586 = vdwg.mxu0
      %v587 = vmax.f32 %v461, 0.0
      %v588 = vmax.f32 %v464, 0.0
      %v589 = vmax.f32 %v469, 0.0
      %v590 = vmax.f32 %v472, 0.0
      %v591 = vmax.f32 %v477, 0.0
      %v592 = vmax.f32 %v480, 0.0
      %v593 = vmax.f32 %v485, 0.0
      %v594 = vmax.f32 %v488, 0.0
      %v595 = vmax.f32 %v493, 0.0
      %v596 = vmax.f32 %v496, 0.0
      %v597 = vmax.f32 %v501, 0.0
      %v598 = vmax.f32 %v504, 0.0
      %v599 = vmax.f32 %v509, 0.0
      %v600 = vmax.f32 %v512, 0.0
      %v601 = vmax.f32 %v517, 0.0
      %v602 = vmax.f32 %v520, 0.0
      %v603 = vmax.f32 %v525, 0.0
      %v604 = vmax.f32 %v528, 0.0
      %v605 = vmax.f32 %v533, 0.0
      %v606 = vmax.f32 %v536, 0.0
      %v607 = vmax.f32 %v541, 0.0
      %v608 = vmax.f32 %v544, 0.0
      %v609 = vmax.f32 %v549, 0.0
      %v610 = vmax.f32 %v552, 0.0
      %v611 = vmax.f32 %v557, 0.0
      %v612 = vmax.f32 %v560, 0.0
      %v613 = vmax.f32 %v565, 0.0
      %v614 = vmax.f32 %v568, 0.0
      %v615 = vmax.f32 %v573, 0.0
      %v616 = vmax.f32 %v576, 0.0
      %v617 = vmax.f32 %v581, 0.0
      %v618 = vmax.f32 %v584, 0.0
      %v619 = vld [vmem:[%s3] sm:$0xff]
      %v620 = vld [vmem:[%s3 + $0x8] sm:$0xff]
      %v621 = vld [vmem:[%s3 + $0x10] sm:$0xff]
      %v622 = vld [vmem:[%s3 + $0x18] sm:$0xff]
      %v623 = vld [vmem:[%s3 + $0x20] sm:$0xff]
      %v624 = vld [vmem:[%s3 + $0x28] sm:$0xff]
      %v625 = vld [vmem:[%s3 + $0x30] sm:$0xff]
      %v626 = vld [vmem:[%s3 + $0x38] sm:$0xff]
      %v627 = vld [vmem:[%s3 + $0x40] sm:$0xff]
      %v628 = vld [vmem:[%s3 + $0x48] sm:$0xff]
      %v629 = vld [vmem:[%s3 + $0x50] sm:$0xff]
      %v630 = vld [vmem:[%s3 + $0x58] sm:$0xff]
      %v631 = vld [vmem:[%s3 + $0x60] sm:$0xff]
      %v632 = vld [vmem:[%s3 + $0x68] sm:$0xff]
      %v633 = vld [vmem:[%s3 + $0x70] sm:$0xff]
      %v634 = vld [vmem:[%s3 + $0x78] sm:$0xff]
      %v635 = vld [vmem:[%s3 + $0x80] sm:$0xff]
      %v636 = vld [vmem:[%s3 + $0x88] sm:$0xff]
      %v637 = vld [vmem:[%s3 + $0x90] sm:$0xff]
      %v638 = vld [vmem:[%s3 + $0x98] sm:$0xff]
      %v639 = vld [vmem:[%s3 + $0xa0] sm:$0xff]
      %v640 = vld [vmem:[%s3 + $0xa8] sm:$0xff]
      %v641 = vld [vmem:[%s3 + $0xb0] sm:$0xff]
      %v642 = vld [vmem:[%s3 + $0xb8] sm:$0xff]
      %v643 = vld [vmem:[%s3 + $0xc0] sm:$0xff]
      %v644 = vld [vmem:[%s3 + $0xc8] sm:$0xff]
      %v645 = vld [vmem:[%s3 + $0xd0] sm:$0xff]
      %v646 = vld [vmem:[%s3 + $0xd8] sm:$0xff]
      %v647 = vld [vmem:[%s3 + $0xe0] sm:$0xff]
      %v648 = vld [vmem:[%s3 + $0xe8] sm:$0xff]
      %v649 = vld [vmem:[%s3 + $0xf0] sm:$0xff]
      %v650 = vld [vmem:[%s3 + $0xf8] sm:$0xff]
      %v651 = vld [vmem:[%s3 + $0x100] sm:$0xff]
      %v652 = vld [vmem:[%s3 + $0x108] sm:$0xff]
      %v653 = vld [vmem:[%s3 + $0x110] sm:$0xff]
      %v654 = vld [vmem:[%s3 + $0x118] sm:$0xff]
      %v655 = vld [vmem:[%s3 + $0x120] sm:$0xff]
      %v656 = vld [vmem:[%s3 + $0x128] sm:$0xff]
      %v657 = vld [vmem:[%s3 + $0x130] sm:$0xff]
      %v658 = vld [vmem:[%s3 + $0x138] sm:$0xff]
      %v659 = vld [vmem:[%s3 + $0x140] sm:$0xff]
      %v660 = vld [vmem:[%s3 + $0x148] sm:$0xff]
      %v661 = vpack.c.bf16 %v588, %v587
      %v662 = vpack.c.bf16 %v590, %v589
      %v663 = vpack.c.bf16 %v592, %v591
      %v664 = vpack.c.bf16 %v594, %v593
      %v665 = vpack.c.bf16 %v596, %v595
      %v666 = vpack.c.bf16 %v598, %v597
      %v667 = vpack.c.bf16 %v600, %v599
      %v668 = vpack.c.bf16 %v602, %v601
      %v669 = vpack.c.bf16 %v604, %v603
      %v670 = vpack.c.bf16 %v606, %v605
      %v671 = vpack.c.bf16 %v608, %v607
      %v672 = vpack.c.bf16 %v610, %v609
      %v673 = vpack.c.bf16 %v612, %v611
      %v674 = vpack.c.bf16 %v614, %v613
      %v675 = vpack.c.bf16 %v616, %v615
      %v676 = vpack.c.bf16 %v618, %v617
      %v719 = vunpack.c.l.b16 %v619
      %v720 = vunpack.c.h.b16 %v619
      %v721 = vunpack.c.l.b16 %v620
      %v722 = vunpack.c.h.b16 %v620
      %v723 = vunpack.c.l.b16 %v621
      %v724 = vunpack.c.h.b16 %v621
      %v725 = vunpack.c.l.b16 %v622
      %v726 = vunpack.c.h.b16 %v622
      %v727 = vunpack.c.l.b16 %v623
      %v728 = vunpack.c.h.b16 %v623
      %v729 = vunpack.c.l.b16 %v624
      %v730 = vunpack.c.h.b16 %v624
      %v731 = vunpack.c.l.b16 %v625
      %v732 = vunpack.c.h.b16 %v625
      %v733 = vunpack.c.l.b16 %v626
      %v734 = vunpack.c.h.b16 %v626
      %v735 = vunpack.c.l.b16 %v627
      %v736 = vunpack.c.h.b16 %v627
      %v737 = vunpack.c.l.b16 %v628
      %v738 = vunpack.c.h.b16 %v628
      %v739 = vunpack.c.l.b16 %v629
      %v740 = vunpack.c.h.b16 %v629
      %v741 = vunpack.c.l.b16 %v630
      %v742 = vunpack.c.h.b16 %v630
      %v743 = vunpack.c.l.b16 %v631
      %v744 = vunpack.c.h.b16 %v631
      %v745 = vunpack.c.l.b16 %v632
      %v746 = vunpack.c.h.b16 %v632
      %v747 = vunpack.c.l.b16 %v633
      %v748 = vunpack.c.h.b16 %v633
      %v749 = vunpack.c.l.b16 %v634
      %v750 = vunpack.c.h.b16 %v634
      %v751 = vunpack.c.l.b16 %v635
      %v752 = vunpack.c.h.b16 %v635
      %v753 = vunpack.c.l.b16 %v636
      %v754 = vunpack.c.h.b16 %v636
      %v755 = vunpack.c.l.b16 %v637
      %v756 = vunpack.c.h.b16 %v637
      %v757 = vunpack.c.l.b16 %v638
      %v758 = vunpack.c.h.b16 %v638
      %v759 = vunpack.c.l.b16 %v639
      %v760 = vunpack.c.h.b16 %v639
      %v761 = vunpack.c.l.b16 %v640
      %v762 = vunpack.c.h.b16 %v640
      %v763 = vunpack.c.l.b16 %v641
      %v764 = vunpack.c.h.b16 %v641
      %v765 = vunpack.c.l.b16 %v642
      %v766 = vunpack.c.h.b16 %v642
      %v767 = vunpack.c.l.b16 %v643
      %v768 = vunpack.c.h.b16 %v643
      %v769 = vunpack.c.l.b16 %v644
      %v770 = vunpack.c.h.b16 %v644
      %v771 = vunpack.c.l.b16 %v645
      %v772 = vunpack.c.h.b16 %v645
      %v773 = vunpack.c.l.b16 %v646
      %v774 = vunpack.c.h.b16 %v646
      %v775 = vunpack.c.l.b16 %v647
      %v776 = vunpack.c.h.b16 %v647
      %v777 = vunpack.c.l.b16 %v648
      %v778 = vunpack.c.h.b16 %v648
      %v779 = vunpack.c.l.b16 %v649
      %v780 = vunpack.c.h.b16 %v649
      %v781 = vunpack.c.l.b16 %v650
      %v782 = vunpack.c.h.b16 %v650
      %v783 = vunpack.c.l.b16 %v651
      %v784 = vunpack.c.h.b16 %v651
      %v785 = vunpack.c.l.b16 %v652
      %v786 = vunpack.c.h.b16 %v652
      %v787 = vunpack.c.l.b16 %v653
      %v788 = vunpack.c.h.b16 %v653
      %v789 = vunpack.c.l.b16 %v654
      %v790 = vunpack.c.h.b16 %v654
      %v791 = vunpack.c.l.b16 %v655
      %v792 = vunpack.c.h.b16 %v655
      %v793 = vunpack.c.l.b16 %v656
      %v794 = vunpack.c.h.b16 %v656
      %v795 = vunpack.c.l.b16 %v657
      %v796 = vunpack.c.h.b16 %v657
      %v797 = vunpack.c.l.b16 %v658
      %v798 = vunpack.c.h.b16 %v658
      %v799 = vunpack.c.l.b16 %v659
      %v800 = vunpack.c.h.b16 %v659
      %v801 = vunpack.c.l.b16 %v660
      %v802 = vunpack.c.h.b16 %v660
      %v803 = vpack.c.b16 %v721, %v719
      %v804 = vpack.c.b16 %v722, %v720
      %v805 = vpack.c.b16 %v725, %v723
      %v806 = vpack.c.b16 %v726, %v724
      %v807 = vpack.c.b16 %v729, %v727
      %v808 = vpack.c.b16 %v730, %v728
      %v809 = vpack.c.b16 %v733, %v731
      %v810 = vpack.c.b16 %v734, %v732
      %v811 = vpack.c.b16 %v737, %v735
      %v812 = vpack.c.b16 %v738, %v736
      %v813 = vpack.c.b16 %v741, %v739
      %v814 = vpack.c.b16 %v742, %v740
      %v815 = vpack.c.b16 %v745, %v743
      %v816 = vpack.c.b16 %v746, %v744
      %v817 = vpack.c.b16 %v749, %v747
      %v818 = vpack.c.b16 %v750, %v748
      %v819 = vpack.c.b16 %v753, %v751
      %v820 = vpack.c.b16 %v754, %v752
      %v821 = vpack.c.b16 %v757, %v755
      %v822 = vpack.c.b16 %v758, %v756
      %v823 = vpack.c.b16 %v761, %v759
      %v824 = vpack.c.b16 %v762, %v760
      %v825 = vpack.c.b16 %v765, %v763
      %v826 = vpack.c.b16 %v766, %v764
      %v827 = vpack.c.b16 %v769, %v767
      %v828 = vpack.c.b16 %v770, %v768
      %v829 = vpack.c.b16 %v773, %v771
      %v830 = vpack.c.b16 %v774, %v772
      %v831 = vpack.c.b16 %v777, %v775
      %v832 = vpack.c.b16 %v778, %v776
      %v833 = vpack.c.b16 %v781, %v779
      %v834 = vpack.c.b16 %v782, %v780
      %v835 = vpack.c.b16 %v785, %v783
      %v836 = vpack.c.b16 %v786, %v784
      %v837 = vpack.c.b16 %v789, %v787
      %v838 = vpack.c.b16 %v790, %v788
      %v839 = vpack.c.b16 %v793, %v791
      %v840 = vpack.c.b16 %v794, %v792
      %v841 = vpack.c.b16 %v797, %v795
      %v842 = vpack.c.b16 %v798, %v796
      %v843 = vpack.c.b16 %v801, %v799
      %v844 = vpack.c.b16 %v802, %v800
      %887 = vmatprep.subr.bf16.mxu0 0
      %888 = vmatpush1.bf16.msra.mxu0 %v661
      %889 = vmatprep.subr.bf16.mxu0 0
      %890 = vmatpush1.bf16.msra.mxu0 %v662
      %891 = vmatprep.subr.bf16.mxu0 0
      %892 = vmatpush1.bf16.msra.mxu0 %v663
      %893 = vmatprep.subr.bf16.mxu0 0
      %894 = vmatpush1.bf16.msra.mxu0 %v664
      %895 = vmatprep.subr.bf16.mxu0 0
      %896 = vmatpush1.bf16.msra.mxu0 %v665
      %897 = vmatprep.subr.bf16.mxu0 0
      %898 = vmatpush1.bf16.msra.mxu0 %v666
      %899 = vmatprep.subr.bf16.mxu0 0
      %900 = vmatpush1.bf16.msra.mxu0 %v667
      %901 = vmatprep.subr.bf16.mxu0 0
      %902 = vmatpush1.bf16.msra.mxu0 %v668
      %903 = vmatprep.subr.bf16.mxu0 0
      %904 = vmatpush1.bf16.msra.mxu0 %v669
      %905 = vmatprep.subr.bf16.mxu0 0
      %906 = vmatpush1.bf16.msra.mxu0 %v670
      %907 = vmatprep.subr.bf16.mxu0 0
      %908 = vmatpush1.bf16.msra.mxu0 %v671
      %909 = vmatprep.subr.bf16.mxu0 0
      %910 = vmatpush1.bf16.msra.mxu0 %v672
      %911 = vmatprep.subr.bf16.mxu0 0
      %912 = vmatpush1.bf16.msra.mxu0 %v673
      %913 = vmatprep.subr.bf16.mxu0 0
      %914 = vmatpush1.bf16.msra.mxu0 %v674
      %915 = vmatprep.subr.bf16.mxu0 0
      %916 = vmatpush1.bf16.msra.mxu0 %v675
      %917 = vmatprep.subr.bf16.mxu0 0
      %918 = vmatpush1.bf16.msra.mxu0 %v676
      %919 = vmatprep.mubr.bf16.mxu0 %v804
      %920 = vmatmul.mubr.bf16.gmra.mrb[0].mxu0 %v803
      %v921 = vpop.f32.mrb[0].mxu0
      %v922 = vadd.f32 0.0, %v921
      %v923 = vpop.f32.mrb[0].mxu0
      %v924 = vpop.f32.mrb[0].mxu0
      %v925 = vadd.f32 0.0, %v924
      %v926 = vpop.f32.mrb[0].mxu0
      %927 = vmatprep.mubr.bf16.mxu0 %v806
      %928 = vmatmul.mubr.bf16.gmra.mrb[0].mxu0 %v805
      %v929 = vpop.f32.mrb[0].mxu0
      %v930 = vadd.f32 0.0, %v929
      %v931 = vpop.f32.mrb[0].mxu0
      %v932 = vpop.f32.mrb[0].mxu0
      %v933 = vadd.f32 0.0, %v932
      %v934 = vpop.f32.mrb[0].mxu0
      %935 = vmatprep.mubr.bf16.mxu0 %v808
      %936 = vmatmul.mubr.bf16.gmra.mrb[0].mxu0 %v807
      %v937 = vpop.f32.mrb[0].mxu0
      %v938 = vadd.f32 0.0, %v937
      %v939 = vpop.f32.mrb[0].mxu0
      %v940 = vpop.f32.mrb[0].mxu0
      %v941 = vadd.f32 0.0, %v940
      %v942 = vpop.f32.mrb[0].mxu0
      %943 = vmatprep.mubr.bf16.mxu0 %v810
      %944 = vmatmul.mubr.bf16.gmra.mrb[0].mxu0 %v809
      %v945 = vpop.f32.mrb[0].mxu0
      %v946 = vadd.f32 0.0, %v945
      %v947 = vpop.f32.mrb[0].mxu0
      %v948 = vpop.f32.mrb[0].mxu0
      %v949 = vadd.f32 0.0, %v948
      %v950 = vpop.f32.mrb[0].mxu0
      %951 = vmatprep.mubr.bf16.mxu0 %v812
      %952 = vmatmul.mubr.bf16.gmra.mrb[0].mxu0 %v811
      %v953 = vpop.f32.mrb[0].mxu0
      %v954 = vadd.f32 0.0, %v953
      %v955 = vpop.f32.mrb[0].mxu0
      %v956 = vpop.f32.mrb[0].mxu0
      %v957 = vadd.f32 0.0, %v956
      %v958 = vpop.f32.mrb[0].mxu0
      %959 = vmatprep.mubr.bf16.mxu0 %v814
      %960 = vmatmul.mubr.bf16.gmra.mrb[0].mxu0 %v813
      %v961 = vpop.f32.mrb[0].mxu0
      %v962 = vadd.f32 0.0, %v961
      %v963 = vpop.f32.mrb[0].mxu0
      %v964 = vpop.f32.mrb[0].mxu0
      %v965 = vadd.f32 0.0, %v964
      %v966 = vpop.f32.mrb[0].mxu0
      %967 = vmatprep.mubr.bf16.mxu0 %v816
      %968 = vmatmul.mubr.bf16.gmra.mrb[0].mxu0 %v815
      %v969 = vpop.f32.mrb[0].mxu0
      %v970 = vadd.f32 0.0, %v969
      %v971 = vpop.f32.mrb[0].mxu0
      %v972 = vpop.f32.mrb[0].mxu0
      %v973 = vadd.f32 0.0, %v972
      %v974 = vpop.f32.mrb[0].mxu0
      %975 = vmatprep.mubr.bf16.mxu0 %v818
      %976 = vmatmul.mubr.bf16.gmra.mrb[0].mxu0 %v817
      %v977 = vpop.f32.mrb[0].mxu0
      %v978 = vadd.f32 0.0, %v977
      %v979 = vpop.f32.mrb[0].mxu0
      %v980 = vpop.f32.mrb[0].mxu0
      %v981 = vadd.f32 0.0, %v980
      %v982 = vpop.f32.mrb[0].mxu0
      %983 = vmatprep.mubr.bf16.mxu0 %v820
      %984 = vmatmul.mubr.bf16.gmra.mrb[0].mxu0 %v819
      %v985 = vpop.f32.mrb[0].mxu0
      %v986 = vadd.f32 0.0, %v985
      %v987 = vpop.f32.mrb[0].mxu0
      %v988 = vpop.f32.mrb[0].mxu0
      %v989 = vadd.f32 0.0, %v988
      %v990 = vpop.f32.mrb[0].mxu0
      %991 = vmatprep.mubr.bf16.mxu0 %v822
      %992 = vmatmul.mubr.bf16.gmra.mrb[0].mxu0 %v821
      %v993 = vpop.f32.mrb[0].mxu0
      %v994 = vadd.f32 0.0, %v993
      %v995 = vpop.f32.mrb[0].mxu0
      %v996 = vpop.f32.mrb[0].mxu0
      %v997 = vadd.f32 0.0, %v996
      %v998 = vpop.f32.mrb[0].mxu0
      %999 = vmatprep.mubr.bf16.mxu0 %v824
      %1000 = vmatmul.mubr.bf16.gmra.mrb[0].mxu0 %v823
      %v1001 = vpop.f32.mrb[0].mxu0
      %v1002 = vadd.f32 0.0, %v1001
      %v1003 = vpop.f32.mrb[0].mxu0
      %v1004 = vpop.f32.mrb[0].mxu0
      %v1005 = vadd.f32 0.0, %v1004
      %v1006 = vpop.f32.mrb[0].mxu0
      %1007 = vmatprep.mubr.bf16.mxu0 %v826
      %1008 = vmatmul.mubr.bf16.gmra.mrb[0].mxu0 %v825
      %v1009 = vpop.f32.mrb[0].mxu0
      %v1010 = vadd.f32 0.0, %v1009
      %v1011 = vpop.f32.mrb[0].mxu0
      %v1012 = vpop.f32.mrb[0].mxu0
      %v1013 = vadd.f32 0.0, %v1012
      %v1014 = vpop.f32.mrb[0].mxu0
      %1015 = vmatprep.mubr.bf16.mxu0 %v828
      %1016 = vmatmul.mubr.bf16.gmra.mrb[0].mxu0 %v827
      %v1017 = vpop.f32.mrb[0].mxu0
      %v1018 = vadd.f32 0.0, %v1017
      %v1019 = vpop.f32.mrb[0].mxu0
      %v1020 = vpop.f32.mrb[0].mxu0
      %v1021 = vadd.f32 0.0, %v1020
      %v1022 = vpop.f32.mrb[0].mxu0
      %1023 = vmatprep.mubr.bf16.mxu0 %v830
      %1024 = vmatmul.mubr.bf16.gmra.mrb[0].mxu0 %v829
      %v1025 = vpop.f32.mrb[0].mxu0
      %v1026 = vadd.f32 0.0, %v1025
      %v1027 = vpop.f32.mrb[0].mxu0
      %v1028 = vpop.f32.mrb[0].mxu0
      %v1029 = vadd.f32 0.0, %v1028
      %v1030 = vpop.f32.mrb[0].mxu0
      %1031 = vmatprep.mubr.bf16.mxu0 %v832
      %1032 = vmatmul.mubr.bf16.gmra.mrb[0].mxu0 %v831
      %v1033 = vpop.f32.mrb[0].mxu0
      %v1034 = vadd.f32 0.0, %v1033
      %v1035 = vpop.f32.mrb[0].mxu0
      %v1036 = vpop.f32.mrb[0].mxu0
      %v1037 = vadd.f32 0.0, %v1036
      %v1038 = vpop.f32.mrb[0].mxu0
      %1039 = vmatprep.mubr.bf16.mxu0 %v834
      %1040 = vmatmul.mubr.bf16.gmra.mrb[0].mxu0 %v833
      %v1041 = vpop.f32.mrb[0].mxu0
      %v1042 = vadd.f32 0.0, %v1041
      %v1043 = vpop.f32.mrb[0].mxu0
      %v1044 = vpop.f32.mrb[0].mxu0
      %v1045 = vadd.f32 0.0, %v1044
      %v1046 = vpop.f32.mrb[0].mxu0
      %1047 = vmatprep.mubr.bf16.mxu0 %v836
      %1048 = vmatmul.mubr.bf16.gmra.mrb[0].mxu0 %v835
      %v1049 = vpop.f32.mrb[0].mxu0
      %v1050 = vadd.f32 0.0, %v1049
      %v1051 = vpop.f32.mrb[0].mxu0
      %v1052 = vpop.f32.mrb[0].mxu0
      %v1053 = vadd.f32 0.0, %v1052
      %v1054 = vpop.f32.mrb[0].mxu0
      %1055 = vmatprep.mubr.bf16.mxu0 %v838
      %1056 = vmatmul.mubr.bf16.gmra.mrb[0].mxu0 %v837
      %v1057 = vpop.f32.mrb[0].mxu0
      %v1058 = vadd.f32 0.0, %v1057
      %v1059 = vpop.f32.mrb[0].mxu0
      %v1060 = vpop.f32.mrb[0].mxu0
      %v1061 = vadd.f32 0.0, %v1060
      %v1062 = vpop.f32.mrb[0].mxu0
      %1063 = vmatprep.mubr.bf16.mxu0 %v840
      %1064 = vmatmul.mubr.bf16.gmra.mrb[0].mxu0 %v839
      %v1065 = vpop.f32.mrb[0].mxu0
      %v1066 = vadd.f32 0.0, %v1065
      %v1067 = vpop.f32.mrb[0].mxu0
      %v1068 = vpop.f32.mrb[0].mxu0
      %v1069 = vadd.f32 0.0, %v1068
      %v1070 = vpop.f32.mrb[0].mxu0
      %1071 = vmatprep.mubr.bf16.mxu0 %v842
      %1072 = vmatmul.mubr.bf16.gmra.mrb[0].mxu0 %v841
      %v1073 = vpop.f32.mrb[0].mxu0
      %v1074 = vadd.f32 0.0, %v1073
      %v1075 = vpop.f32.mrb[0].mxu0
      %v1076 = vpop.f32.mrb[0].mxu0
      %v1077 = vadd.f32 0.0, %v1076
      %v1078 = vpop.f32.mrb[0].mxu0
      %1079 = vmatprep.mubr.bf16.mxu0 %v844
      %1080 = vmatmul.mubr.bf16.gmra.mrb[0].mxu0 %v843
      %v1081 = vpop.f32.mrb[0].mxu0
      %v1082 = vadd.f32 0.0, %v1081
      %v1083 = vpop.f32.mrb[0].mxu0
      %v1084 = vpop.f32.mrb[0].mxu0
      %v1085 = vadd.f32 0.0, %v1084
      %v1086 = vpop.f32.mrb[0].mxu0
      %1087 = vdwg.mxu0
      %v1088 = vpack.c.bf16 %v925, %v922
      %v1089 = vpack.c.bf16 %v933, %v930
      %v1090 = vpack.c.bf16 %v941, %v938
      %v1091 = vpack.c.bf16 %v949, %v946
      %v1092 = vpack.c.bf16 %v957, %v954
      %v1093 = vpack.c.bf16 %v965, %v962
      %v1094 = vpack.c.bf16 %v973, %v970
      %v1095 = vpack.c.bf16 %v981, %v978
      %v1096 = vpack.c.bf16 %v989, %v986
      %v1097 = vpack.c.bf16 %v997, %v994
      %v1098 = vpack.c.bf16 %v1005, %v1002
      %v1099 = vpack.c.bf16 %v1013, %v1010
      %v1100 = vpack.c.bf16 %v1021, %v1018
      %v1101 = vpack.c.bf16 %v1029, %v1026
      %v1102 = vpack.c.bf16 %v1037, %v1034
      %v1103 = vpack.c.bf16 %v1045, %v1042
      %v1104 = vpack.c.bf16 %v1053, %v1050
      %v1105 = vpack.c.bf16 %v1061, %v1058
      %v1106 = vpack.c.bf16 %v1069, %v1066
      %v1107 = vpack.c.bf16 %v1077, %v1074
      %v1108 = vpack.c.bf16 %v1085, %v1082
      %v1109 = vld [vmem:[%s4] sm:$0xf]
      %v1110 = vld [vmem:[%s4 + $0x4] sm:$0xf]
      %v1111 = vld [vmem:[%s4 + $0x8] sm:$0xf]
      %v1112 = vld [vmem:[%s4 + $0xc] sm:$0xf]
      %v1113 = vld [vmem:[%s4 + $0x10] sm:$0xf]
      %v1114 = vld [vmem:[%s4 + $0x14] sm:$0xf]
      %v1115 = vld [vmem:[%s4 + $0x18] sm:$0xf]
      %v1116 = vld [vmem:[%s4 + $0x1c] sm:$0xf]
      %v1117 = vld [vmem:[%s4 + $0x20] sm:$0xf]
      %v1118 = vld [vmem:[%s4 + $0x24] sm:$0xf]
      %v1119 = vld [vmem:[%s4 + $0x28] sm:$0xf]
      %v1120 = vld [vmem:[%s4 + $0x2c] sm:$0xf]
      %v1121 = vld [vmem:[%s4 + $0x30] sm:$0xf]
      %v1122 = vld [vmem:[%s4 + $0x34] sm:$0xf]
      %v1123 = vld [vmem:[%s4 + $0x38] sm:$0xf]
      %v1124 = vld [vmem:[%s4 + $0x3c] sm:$0xf]
      %v1125 = vld [vmem:[%s5] sm:$0x1]
      %v1127 = vlaneseq
      %v1128 = vshrl.u32 %v1127, 7
      %v1129 = vsub.s32 0, %v1128
      %v1130 = vrot.slane %v1125, %v1129
      %v1148 = vunpack.c.l.b16 %v1109
      %v1149 = vunpack.c.l.b16 %v1110
      %v1150 = vunpack.c.l.b16 %v1111
      %v1151 = vunpack.c.l.b16 %v1112
      %v1152 = vunpack.c.l.b16 %v1113
      %v1153 = vunpack.c.l.b16 %v1114
      %v1154 = vunpack.c.l.b16 %v1115
      %v1155 = vunpack.c.l.b16 %v1116
      %v1156 = vunpack.c.l.b16 %v1117
      %v1157 = vunpack.c.l.b16 %v1118
      %v1158 = vunpack.c.l.b16 %v1119
      %v1159 = vunpack.c.l.b16 %v1120
      %v1160 = vunpack.c.l.b16 %v1121
      %v1161 = vunpack.c.l.b16 %v1122
      %v1162 = vunpack.c.l.b16 %v1123
      %v1163 = vunpack.c.l.b16 %v1124
      %v1164 = vpack.c.b16 %v1149, %v1148
      %v1165 = vpack.c.b16 %v1151, %v1150
      %v1166 = vpack.c.b16 %v1153, %v1152
      %v1167 = vpack.c.b16 %v1155, %v1154
      %v1168 = vpack.c.b16 %v1157, %v1156
      %v1169 = vpack.c.b16 %v1159, %v1158
      %v1170 = vpack.c.b16 %v1161, %v1160
      %v1171 = vpack.c.b16 %v1163, %v1162
      %1180 = vmatprep.subr.bf16.mxu0 0
      %1181 = vmatpush1.bf16.msra.mxu0 %v1164
      %1182 = vmatprep.subr.bf16.mxu0 0
      %1183 = vmatpush1.bf16.msra.mxu0 %v1165
      %1184 = vmatprep.subr.bf16.mxu0 0
      %1185 = vmatpush1.bf16.msra.mxu0 %v1166
      %1186 = vmatprep.subr.bf16.mxu0 0
      %1187 = vmatpush1.bf16.msra.mxu0 %v1167
      %1188 = vmatprep.subr.bf16.mxu0 0
      %1189 = vmatpush1.bf16.msra.mxu0 %v1168
      %1190 = vmatprep.subr.bf16.mxu0 0
      %1191 = vmatpush1.bf16.msra.mxu0 %v1169
      %1192 = vmatprep.subr.bf16.mxu0 0
      %1193 = vmatpush1.bf16.msra.mxu0 %v1170
      %1194 = vmatprep.subr.bf16.mxu0 0
      %1195 = vmatpush1.bf16.msra.mxu0 %v1171
      %1196 = vmatprep.subr.bf16.mxu0 0
      %1197 = vmatpush1.bf16.msra.mxu0 0
      %1198 = vmatprep.subr.bf16.mxu0 0
      %1199 = vmatpush1.bf16.msra.mxu0 0
      %1200 = vmatprep.subr.bf16.mxu0 0
      %1201 = vmatpush1.bf16.msra.mxu0 0
      %1202 = vmatprep.subr.bf16.mxu0 0
      %1203 = vmatpush1.bf16.msra.mxu0 0
      %1204 = vmatprep.subr.bf16.mxu0 0
      %1205 = vmatpush1.bf16.msra.mxu0 0
      %1206 = vmatprep.subr.bf16.mxu0 0
      %1207 = vmatpush1.bf16.msra.mxu0 0
      %1208 = vmatprep.subr.bf16.mxu0 0
      %1209 = vmatpush1.bf16.msra.mxu0 0
      %1210 = vmatprep.subr.bf16.mxu0 0
      %1211 = vmatpush1.bf16.msra.mxu0 0
      %1212 = vmatprep.mubr.bf16.mxu0 0
      %1213 = vmatmul.mubr.bf16.gmra.mrb[0].mxu0 %v1088
      %v1214 = vpop.f32.mrb[0].mxu0
      %v1215 = vadd.f32 %v1130, %v1214
      %v1216 = vpop.f32.mrb[0].mxu0
      %v1217 = vpop.f32.mrb[0].mxu0
      %v1218 = vadd.f32 %v1130, %v1217
      %v1219 = vpop.f32.mrb[0].mxu0
      %1220 = vmatprep.mubr.bf16.mxu0 0
      %1221 = vmatmul.mubr.bf16.gmra.mrb[0].mxu0 %v1089
      %v1222 = vpop.f32.mrb[0].mxu0
      %v1223 = vadd.f32 %v1130, %v1222
      %v1224 = vpop.f32.mrb[0].mxu0
      %v1225 = vpop.f32.mrb[0].mxu0
      %v1226 = vadd.f32 %v1130, %v1225
      %v1227 = vpop.f32.mrb[0].mxu0
      %1228 = vmatprep.mubr.bf16.mxu0 0
      %1229 = vmatmul.mubr.bf16.gmra.mrb[0].mxu0 %v1090
      %v1230 = vpop.f32.mrb[0].mxu0
      %v1231 = vadd.f32 %v1130, %v1230
      %v1232 = vpop.f32.mrb[0].mxu0
      %v1233 = vpop.f32.mrb[0].mxu0
      %v1234 = vadd.f32 %v1130, %v1233
      %v1235 = vpop.f32.mrb[0].mxu0
      %1236 = vmatprep.mubr.bf16.mxu0 0
      %1237 = vmatmul.mubr.bf16.gmra.mrb[0].mxu0 %v1091
      %v1238 = vpop.f32.mrb[0].mxu0
      %v1239 = vadd.f32 %v1130, %v1238
      %v1240 = vpop.f32.mrb[0].mxu0
      %v1241 = vpop.f32.mrb[0].mxu0
      %v1242 = vadd.f32 %v1130, %v1241
      %v1243 = vpop.f32.mrb[0].mxu0
      %1244 = vmatprep.mubr.bf16.mxu0 0
      %1245 = vmatmul.mubr.bf16.gmra.mrb[0].mxu0 %v1092
      %v1246 = vpop.f32.mrb[0].mxu0
      %v1247 = vadd.f32 %v1130, %v1246
      %v1248 = vpop.f32.mrb[0].mxu0
      %v1249 = vpop.f32.mrb[0].mxu0
      %v1250 = vadd.f32 %v1130, %v1249
      %v1251 = vpop.f32.mrb[0].mxu0
      %1252 = vmatprep.mubr.bf16.mxu0 0
      %1253 = vmatmul.mubr.bf16.gmra.mrb[0].mxu0 %v1093
      %v1254 = vpop.f32.mrb[0].mxu0
      %v1255 = vadd.f32 %v1130, %v1254
      %v1256 = vpop.f32.mrb[0].mxu0
      %v1257 = vpop.f32.mrb[0].mxu0
      %v1258 = vadd.f32 %v1130, %v1257
      %v1259 = vpop.f32.mrb[0].mxu0
      %1260 = vmatprep.mubr.bf16.mxu0 0
      %1261 = vmatmul.mubr.bf16.gmra.mrb[0].mxu0 %v1094
      %v1262 = vpop.f32.mrb[0].mxu0
      %v1263 = vadd.f32 %v1130, %v1262
      %v1264 = vpop.f32.mrb[0].mxu0
      %v1265 = vpop.f32.mrb[0].mxu0
      %v1266 = vadd.f32 %v1130, %v1265
      %v1267 = vpop.f32.mrb[0].mxu0
      %1268 = vmatprep.mubr.bf16.mxu0 0
      %1269 = vmatmul.mubr.bf16.gmra.mrb[0].mxu0 %v1095
      %v1270 = vpop.f32.mrb[0].mxu0
      %v1271 = vadd.f32 %v1130, %v1270
      %v1272 = vpop.f32.mrb[0].mxu0
      %v1273 = vpop.f32.mrb[0].mxu0
      %v1274 = vadd.f32 %v1130, %v1273
      %v1275 = vpop.f32.mrb[0].mxu0
      %1276 = vmatprep.mubr.bf16.mxu0 0
      %1277 = vmatmul.mubr.bf16.gmra.mrb[0].mxu0 %v1096
      %v1278 = vpop.f32.mrb[0].mxu0
      %v1279 = vadd.f32 %v1130, %v1278
      %v1280 = vpop.f32.mrb[0].mxu0
      %v1281 = vpop.f32.mrb[0].mxu0
      %v1282 = vadd.f32 %v1130, %v1281
      %v1283 = vpop.f32.mrb[0].mxu0
      %1284 = vmatprep.mubr.bf16.mxu0 0
      %1285 = vmatmul.mubr.bf16.gmra.mrb[0].mxu0 %v1097
      %v1286 = vpop.f32.mrb[0].mxu0
      %v1287 = vadd.f32 %v1130, %v1286
      %v1288 = vpop.f32.mrb[0].mxu0
      %v1289 = vpop.f32.mrb[0].mxu0
      %v1290 = vadd.f32 %v1130, %v1289
      %v1291 = vpop.f32.mrb[0].mxu0
      %1292 = vmatprep.mubr.bf16.mxu0 0
      %1293 = vmatmul.mubr.bf16.gmra.mrb[0].mxu0 %v1098
      %v1294 = vpop.f32.mrb[0].mxu0
      %v1295 = vadd.f32 %v1130, %v1294
      %v1296 = vpop.f32.mrb[0].mxu0
      %v1297 = vpop.f32.mrb[0].mxu0
      %v1298 = vadd.f32 %v1130, %v1297
      %v1299 = vpop.f32.mrb[0].mxu0
      %1300 = vmatprep.mubr.bf16.mxu0 0
      %1301 = vmatmul.mubr.bf16.gmra.mrb[0].mxu0 %v1099
      %v1302 = vpop.f32.mrb[0].mxu0
      %v1303 = vadd.f32 %v1130, %v1302
      %v1304 = vpop.f32.mrb[0].mxu0
      %v1305 = vpop.f32.mrb[0].mxu0
      %v1306 = vadd.f32 %v1130, %v1305
      %v1307 = vpop.f32.mrb[0].mxu0
      %1308 = vmatprep.mubr.bf16.mxu0 0
      %1309 = vmatmul.mubr.bf16.gmra.mrb[0].mxu0 %v1100
      %v1310 = vpop.f32.mrb[0].mxu0
      %v1311 = vadd.f32 %v1130, %v1310
      %v1312 = vpop.f32.mrb[0].mxu0
      %v1313 = vpop.f32.mrb[0].mxu0
      %v1314 = vadd.f32 %v1130, %v1313
      %v1315 = vpop.f32.mrb[0].mxu0
      %1316 = vmatprep.mubr.bf16.mxu0 0
      %1317 = vmatmul.mubr.bf16.gmra.mrb[0].mxu0 %v1101
      %v1318 = vpop.f32.mrb[0].mxu0
      %v1319 = vadd.f32 %v1130, %v1318
      %v1320 = vpop.f32.mrb[0].mxu0
      %v1321 = vpop.f32.mrb[0].mxu0
      %v1322 = vadd.f32 %v1130, %v1321
      %v1323 = vpop.f32.mrb[0].mxu0
      %1324 = vmatprep.mubr.bf16.mxu0 0
      %1325 = vmatmul.mubr.bf16.gmra.mrb[0].mxu0 %v1102
      %v1326 = vpop.f32.mrb[0].mxu0
      %v1327 = vadd.f32 %v1130, %v1326
      %v1328 = vpop.f32.mrb[0].mxu0
      %v1329 = vpop.f32.mrb[0].mxu0
      %v1330 = vadd.f32 %v1130, %v1329
      %v1331 = vpop.f32.mrb[0].mxu0
      %1332 = vmatprep.mubr.bf16.mxu0 0
      %1333 = vmatmul.mubr.bf16.gmra.mrb[0].mxu0 %v1103
      %v1334 = vpop.f32.mrb[0].mxu0
      %v1335 = vadd.f32 %v1130, %v1334
      %v1336 = vpop.f32.mrb[0].mxu0
      %v1337 = vpop.f32.mrb[0].mxu0
      %v1338 = vadd.f32 %v1130, %v1337
      %v1339 = vpop.f32.mrb[0].mxu0
      %1340 = vmatprep.mubr.bf16.mxu0 0
      %1341 = vmatmul.mubr.bf16.gmra.mrb[0].mxu0 %v1104
      %v1342 = vpop.f32.mrb[0].mxu0
      %v1343 = vadd.f32 %v1130, %v1342
      %v1344 = vpop.f32.mrb[0].mxu0
      %v1345 = vpop.f32.mrb[0].mxu0
      %v1346 = vadd.f32 %v1130, %v1345
      %v1347 = vpop.f32.mrb[0].mxu0
      %1348 = vmatprep.mubr.bf16.mxu0 0
      %1349 = vmatmul.mubr.bf16.gmra.mrb[0].mxu0 %v1105
      %v1350 = vpop.f32.mrb[0].mxu0
      %v1351 = vadd.f32 %v1130, %v1350
      %v1352 = vpop.f32.mrb[0].mxu0
      %v1353 = vpop.f32.mrb[0].mxu0
      %v1354 = vadd.f32 %v1130, %v1353
      %v1355 = vpop.f32.mrb[0].mxu0
      %1356 = vmatprep.mubr.bf16.mxu0 0
      %1357 = vmatmul.mubr.bf16.gmra.mrb[0].mxu0 %v1106
      %v1358 = vpop.f32.mrb[0].mxu0
      %v1359 = vadd.f32 %v1130, %v1358
      %v1360 = vpop.f32.mrb[0].mxu0
      %v1361 = vpop.f32.mrb[0].mxu0
      %v1362 = vadd.f32 %v1130, %v1361
      %v1363 = vpop.f32.mrb[0].mxu0
      %1364 = vmatprep.mubr.bf16.mxu0 0
      %1365 = vmatmul.mubr.bf16.gmra.mrb[0].mxu0 %v1107
      %v1366 = vpop.f32.mrb[0].mxu0
      %v1367 = vadd.f32 %v1130, %v1366
      %v1368 = vpop.f32.mrb[0].mxu0
      %v1369 = vpop.f32.mrb[0].mxu0
      %v1370 = vadd.f32 %v1130, %v1369
      %v1371 = vpop.f32.mrb[0].mxu0
      %1372 = vmatprep.mubr.bf16.mxu0 0
      %1373 = vmatmul.mubr.bf16.gmra.mrb[0].mxu0 %v1108
      %v1374 = vpop.f32.mrb[0].mxu0
      %v1375 = vadd.f32 %v1130, %v1374
      %v1376 = vpop.f32.mrb[0].mxu0
      %v1377 = vpop.f32.mrb[0].mxu0
      %v1378 = vadd.f32 %v1130, %v1377
      %v1379 = vpop.f32.mrb[0].mxu0
      %1380 = vdwg.mxu0
      %1381 = vst [vmem:[%s251] sm:$0xff] %v1215
      %1382 = vst [vmem:[%s251 + $0x8] sm:$0xff] %v1218
      %1383 = vst [vmem:[%s251 + $0x10] sm:$0xff] %v1223
      %1384 = vst [vmem:[%s251 + $0x18] sm:$0xff] %v1226
      %1385 = vst [vmem:[%s251 + $0x20] sm:$0xff] %v1231
      %1386 = vst [vmem:[%s251 + $0x28] sm:$0xff] %v1234
      %1387 = vst [vmem:[%s251 + $0x30] sm:$0xff] %v1239
      %1388 = vst [vmem:[%s251 + $0x38] sm:$0xff] %v1242
      %1389 = vst [vmem:[%s251 + $0x40] sm:$0xff] %v1247
      %1390 = vst [vmem:[%s251 + $0x48] sm:$0xff] %v1250
      %1391 = vst [vmem:[%s251 + $0x50] sm:$0xff] %v1255
      %1392 = vst [vmem:[%s251 + $0x58] sm:$0xff] %v1258
      %1393 = vst [vmem:[%s251 + $0x60] sm:$0xff] %v1263
      %1394 = vst [vmem:[%s251 + $0x68] sm:$0xff] %v1266
      %1395 = vst [vmem:[%s251 + $0x70] sm:$0xff] %v1271
      %1396 = vst [vmem:[%s251 + $0x78] sm:$0xff] %v1274
      %1397 = vst [vmem:[%s251 + $0x80] sm:$0xff] %v1279
      %1398 = vst [vmem:[%s251 + $0x88] sm:$0xff] %v1282
      %1399 = vst [vmem:[%s251 + $0x90] sm:$0xff] %v1287
      %1400 = vst [vmem:[%s251 + $0x98] sm:$0xff] %v1290
      %1401 = vst [vmem:[%s251 + $0xa0] sm:$0xff] %v1295
      %1402 = vst [vmem:[%s251 + $0xa8] sm:$0xff] %v1298
      %1403 = vst [vmem:[%s251 + $0xb0] sm:$0xff] %v1303
      %1404 = vst [vmem:[%s251 + $0xb8] sm:$0xff] %v1306
      %1405 = vst [vmem:[%s251 + $0xc0] sm:$0xff] %v1311
      %1406 = vst [vmem:[%s251 + $0xc8] sm:$0xff] %v1314
      %1407 = vst [vmem:[%s251 + $0xd0] sm:$0xff] %v1319
      %1408 = vst [vmem:[%s251 + $0xd8] sm:$0xff] %v1322
      %1409 = vst [vmem:[%s251 + $0xe0] sm:$0xff] %v1327
      %1410 = vst [vmem:[%s251 + $0xe8] sm:$0xff] %v1330
      %1411 = vst [vmem:[%s251 + $0xf0] sm:$0xff] %v1335
      %1412 = vst [vmem:[%s251 + $0xf8] sm:$0xff] %v1338
      %1413 = vst [vmem:[%s251 + $0x100] sm:$0xff] %v1343
      %1414 = vst [vmem:[%s251 + $0x108] sm:$0xff] %v1346
      %1415 = vst [vmem:[%s251 + $0x110] sm:$0xff] %v1351
      %1416 = vst [vmem:[%s251 + $0x118] sm:$0xff] %v1354
      %1417 = vst [vmem:[%s251 + $0x120] sm:$0xff] %v1359
      %1418 = vst [vmem:[%s251 + $0x128] sm:$0xff] %v1362
      %1419 = vst [vmem:[%s251 + $0x130] sm:$0xff] %v1367
      %1420 = vst [vmem:[%s251 + $0x138] sm:$0xff] %v1370
      %1421 = vst [vmem:[%s251 + $0x140] sm:$0xff] %v1375
      %1422 = vst [vmem:[%s251 + $0x148] sm:$0xff] %v1378
      %p1423 = scmp.lt.s32.totalorder %s17, 1
      %s1424 = scalar_select %p1423, %s17, 1
      %s1425 = smul.addr %s1424, 42
      %s1426 = smul.addr %s1425, 8
      %s1427 = scalar_lea.vmem %s6, %s1426
      // Predicated region
      $region45: #{detection_model_forward.1} parent=43 // pred_check
        %p1428 = pneg %p166
      $region46: #{detection_model_forward.1} parent=43 // pred_check_branch
        %1430 = sbr.rel (%p1428) target = $region48
      $region47: #{detection_model_forward.1} parent=43 // pred_region
        _
      $region48: #{detection_model_forward.1} parent=43 // pred_fallthru
        _
    $region44: #{detection_model_forward.1} parent=5 // pred_fallthru
      _
    %p1431 = scmp.le.s32.totalorder 2, %s12
    // Predicated region
    $region49: #{detection_model_forward.1} parent=5 // pred_check
      %p1432 = pneg %p1431
    $region50: #{detection_model_forward.1} parent=5 // pred_check_branch
      %1434 = sbr.rel (%p1432) target = $region52
    $region51: #{detection_model_forward.1} parent=5 // pred_region
      %s1435 = ssub.s32 %s12, 2
      // Predicated region
      $region53: #{detection_model_forward.1} parent=51 // pred_check
        %p1436 = pneg %p172
      $region54: #{detection_model_forward.1} parent=51 // pred_check_branch
        %1438 = sbr.rel (%p1436) target = $region56
      $region55: #{detection_model_forward.1} parent=51 // pred_region
        %p1439 = scmp.lt.s32.totalorder %s18, 1
        %s1440 = scalar_select %p1439, %s18, 1
        %s1441 = smul.addr %s1440, 42
        %s1442 = smul.addr %s1441, 8
        %s1443 = scalar_lea.vmem %s6, %s1442
      $region56: #{detection_model_forward.1} parent=51 // pred_fallthru
        _
    $region52: #{detection_model_forward.1} parent=5 // pred_fallthru
      _
  $region6: #{detection_model_forward.1} parent=0 // loop_footer
    %s16 = sadd.s32 1, %s12
  $region7: #{detection_model_forward.1} parent=0 // loop_footer_branch
    %11 = sbr.rel target = $region3
  $region8: #{detection_model_forward.1} parent=0 // loop_exit
    _

</llo_original>
